<compile_context>
chip_gen: v5e
topology: v5e:2x2
jax: 0.10.0
libtpu: 0.0.40
codegen_flags: <defaults>
</compile_context>

<pallas_src>
import functools

import jax
import jax.numpy as jnp
from jax.experimental import pallas as pl
from jax.experimental.pallas import tpu as pltpu

LANE = 128


def _round_up(x, m):
    return (x + m - 1) // m * m


def _device_kind():
    try:
        return jax.devices()[0].device_kind.lower()
    except Exception:
        return ""


def _is_v5e(kind):
    return any(s in kind for s in ("v5 lite", "v5lite", "v5e"))


def _default_epilogue_dtype():
    # v5e's VPU has no bf16 path -> keep bias+ReLU in f32 there.
    return jnp.float32 if _is_v5e(_device_kind()) else jnp.bfloat16


def _preferred_tile_m(kind):
    # TILE_M is the streamed (row) dimension, not the MXU width: make each grid
    # step big enough to amortize the ~0.35 us fixed per-step pipeline overhead.
    #   v5e : 512  (f32 epilogue doubles intermediates; 128 MiB VMEM)
    #   v6e : 1024 (128 MiB VMEM; ~15 MiB footprint with bf16 epilogue)
    #   v7x : 1024 still fits comfortably under the 64 MiB/TC ceiling.
    if _is_v5e(kind):
        return 512
    return 1024


def _vmem_limit_bytes(tile_m, d_in, d1, d2, d3, d4, ep_bytes, kind):
    """Right-size the scoped-VMEM limit from the per-step footprint."""
    io = 2 * tile_m * (d_in + d4) * 4                       # double-buffered x/out tiles (f32)
    weights = 2 * 2 * (d_in * d1 + d1 * d2 + d2 * d3 + d3 * d4)  # bf16, 2 pipeline buffers
    biases = 2 * 4 * (d1 + d2 + d3 + d4)
    # f32 MXU results + epilogue-dtype copies of the hidden activations.
    inter = tile_m * (d1 + d2 + d3) * (4 + ep_bytes) + tile_m * d4 * 4
    est = io + weights + biases + inter
    limit = int(est * 1.5) + (4 << 20)                      # 50% headroom + 4 MiB slack
    cap = (48 << 20) if "v7" in kind else (96 << 20)        # v7x: 64 MiB physical per TC
    return max(24 << 20, min(limit, cap))


def _dimension_semantics(num_tiles, kind):
    # On v7x (2 TensorCores/chip) request core-parallel sharding of the batch
    # axis when there is more than one tile; plain "parallel" elsewhere.
    if "v7" in kind and num_tiles >= 2:
        core_parallel = getattr(pltpu, "CORE_PARALLEL", None)
        if core_parallel is not None:
            return (core_parallel,)
    return ("parallel",)


def _mlp_kernel(x_ref, w1_ref, b1_ref, w2_ref, b2_ref,
                w3_ref, b3_ref, w4_ref, b4_ref, o_ref, *, epilogue_dtype):
    """One (TILE_M, :) batch tile through the full 4-layer MLP.

    Dropout with p=0.0 is the identity and is elided.
    # TODO(synk): for nonzero dropout_rate, add pltpu.prng_seed +
    # pltpu.stateful_bernoulli masking between the layers.
    """
    bf16, f32 = jnp.bfloat16, jnp.float32
    ep = epilogue_dtype

    # Streamed f32 x tile is cast to bf16 in-kernel (no wrapper-side HBM pass).
    h = x_ref[...].astype(bf16)

    # Hidden layers: bf16 x bf16 -> f32 MXU accumulate; bias + ReLU epilogue in
    # `ep` (bf16 on v6e/v7x, f32 on v5e), then back to bf16 for the next MXU op.
    for w_ref, b_ref in ((w1_ref, b1_ref), (w2_ref, b2_ref), (w3_ref, b3_ref)):
        z = jnp.dot(h, w_ref[...], preferred_element_type=f32)
        h = jnp.maximum(z.astype(ep) + b_ref[...], 0.0).astype(bf16)

    # Task head (no ReLU); epilogue and output kept in f32.
    z = jnp.dot(h, w4_ref[...], preferred_element_type=f32)
    o_ref[...] = (z + b4_ref[...]).astype(o_ref.dtype)


def init_params(key, input_dim, n_classes):
    """Deterministic init mimicking PyTorch nn.Linear (uniform +-1/sqrt(fan_in)).

    Weights are stored (in_features, out_features) so forward is y = x @ W + b.
    """
    dims = [(input_dim, 1000), (1000, 500), (500, 100), (100, n_classes)]
    params = {}
    for idx, (fan_in, fan_out) in enumerate(dims, start=1):
        key, kw, kb = jax.random.split(key, 3)
        bound = 1.0 / (fan_in ** 0.5)
        params[f"w{idx}"] = jax.random.uniform(
            kw, (fan_in, fan_out), jnp.float32, minval=-bound, maxval=bound)
        params[f"b{idx}"] = jax.random.uniform(
            kb, (1, fan_out), jnp.float32, minval=-bound, maxval=bound)
    return params


def prepare_params(params_f32, epilogue_dtype=None):
    """Cast weights to bf16 and zero-pad hidden/output feature dims to x128.

    w1's input dim is left unpadded so x can stream into the kernel unmodified.
    Hidden biases are stored in the epilogue dtype; the head bias stays f32.
    Padding is exact: padded weight rows/cols and bias entries are zero,
    ReLU(0) = 0, and padded output columns are sliced off outside.
    """
    if epilogue_dtype is None:
        epilogue_dtype = _default_epilogue_dtype()
    prepared = {}
    for i in (1, 2, 3, 4):
        w = params_f32[f"w{i}"]
        b = params_f32[f"b{i}"]
        fin, fout = w.shape
        fin_p = fin if i == 1 else _round_up(fin, LANE)
        fout_p = _round_up(fout, LANE)
        prepared[f"w{i}"] = jnp.pad(
            w, ((0, fin_p - fin), (0, fout_p - fout))).astype(jnp.bfloat16)
        b_dtype = epilogue_dtype if i < 4 else jnp.float32
        prepared[f"b{i}"] = jnp.pad(
            b, ((0, 0), (0, fout_p - fout))).astype(b_dtype)
    return prepared


@functools.partial(jax.jit, static_argnames=("n_classes",))
def simple_mlp_forward(x, prepared, n_classes):
    """x: (batch, input_dim) f32; prepared: output of prepare_params."""
    batch, input_dim = x.shape
    d_in, d1 = prepared["w1"].shape
    d2 = prepared["w2"].shape[1]
    d3 = prepared["w3"].shape[1]
    d4 = prepared["w4"].shape[1]

    epilogue_dtype = prepared["b1"].dtype
    ep_bytes = jnp.dtype(epilogue_dtype).itemsize
    kind = _device_kind()

    tile_m = min(_preferred_tile_m(kind), _round_up(batch, 8))
    batch_p = _round_up(batch, tile_m)
    num_tiles = batch_p // tile_m

    # Only pad the batch when it is ragged w.r.t. TILE_M; otherwise x streams
    # straight from HBM (the bf16 cast happens inside the kernel).
    x_in = x if batch_p == batch else jnp.pad(x, ((0, batch_p - batch), (0, 0)))

    def tiled(i):          # activation tiles march down the batch
        return (i, 0)

    def resident(i):       # weights/biases: same block every step -> VMEM-resident
        return (0, 0)

    flops = 2 * batch_p * (d_in * d1 + d1 * d2 + d2 * d3 + d3 * d4)
    bytes_accessed = (
        batch_p * d_in * 4 + batch_p * d4 * 4
        + 2 * (d_in * d1 + d1 * d2 + d2 * d3 + d3 * d4)
        + ep_bytes * (d1 + d2 + d3) + 4 * d4)

    kernel = functools.partial(_mlp_kernel, epilogue_dtype=epilogue_dtype)

    out_p = pl.pallas_call(
        kernel,
        out_shape=jax.ShapeDtypeStruct((batch_p, d4), jnp.float32),
        grid_spec=pltpu.PrefetchScalarGridSpec(
            num_scalar_prefetch=0,
            grid=(num_tiles,),
            in_specs=[
                pl.BlockSpec((tile_m, d_in), tiled),   # x tile (streamed, f32)
                pl.BlockSpec((d_in, d1), resident),    # w1 (resident, bf16)
                pl.BlockSpec((1, d1), resident),       # b1
                pl.BlockSpec((d1, d2), resident),      # w2
                pl.BlockSpec((1, d2), resident),       # b2
                pl.BlockSpec((d2, d3), resident),      # w3
                pl.BlockSpec((1, d3), resident),       # b3
                pl.BlockSpec((d3, d4), resident),      # w4
                pl.BlockSpec((1, d4), resident),       # b4
            ],
            out_specs=pl.BlockSpec((tile_m, d4), tiled),
        ),
        compiler_params=pltpu.CompilerParams(
            dimension_semantics=_dimension_semantics(num_tiles, kind),
            vmem_limit_bytes=_vmem_limit_bytes(
                tile_m, d_in, d1, d2, d3, d4, ep_bytes, kind),
        ),
        cost_estimate=pl.CostEstimate(
            flops=flops, transcendentals=0, bytes_accessed=bytes_accessed),
    )(x_in,
      prepared["w1"], prepared["b1"],
      prepared["w2"], prepared["b2"],
      prepared["w3"], prepared["b3"],
      prepared["w4"], prepared["b4"])

    # Strip batch and class padding.
    return out_p[:batch, :n_classes]


def reference_forward(x, params_f32, epilogue_dtype):
    """Pure-JAX reference matching the kernel's precision contract:
    bf16 weights/activations, f32 accumulation, bias+ReLU in epilogue_dtype."""
    bf16, f32 = jnp.bfloat16, jnp.float32
    hp = jax.lax.Precision.HIGHEST
    ep = epilogue_dtype
    h = x.astype(bf16)
    for i in (1, 2, 3):
        w = params_f32[f"w{i}"].astype(bf16)
        z = jnp.dot(h.astype(f32), w.astype(f32), precision=hp)
        z = z.astype(ep) + params_f32[f"b{i}"].astype(ep)
        h = jnp.maximum(z, 0.0).astype(bf16)
    w4 = params_f32["w4"].astype(bf16)
    z = jnp.dot(h.astype(f32), w4.astype(f32), precision=hp)
    return z + params_f32["b4"]


if __name__ == "__main__":
    batch, input_dim, n_classes = 8, 64, 10
    key = jax.random.PRNGKey(0)
    key, kx = jax.random.split(key)
    x = jax.random.normal(kx, (batch, input_dim), jnp.float32)

    params = init_params(key, input_dim, n_classes)
    prepared = prepare_params(params)

    out = simple_mlp_forward(x, prepared, n_classes)
    out = jax.block_until_ready(out)

    ref = reference_forward(x, params, prepared["b1"].dtype)
    assert out.shape == (batch, n_classes)
    max_err = float(jnp.max(jnp.abs(out - ref)))
    assert jnp.allclose(out, ref, atol=2e-2, rtol=2e-2), (
        f"mismatch vs reference: max abs err = {max_err}")

    print("KERNEL_OK")
</pallas_src>

<mosaic_0001>
module attributes {stable_mosaic.version = 11 : i64} {
  func.func @_mlp_kernel(%arg0: i32, %arg1: memref<8x64xf32, #tpu.memory_space<vmem>>, %arg2: memref<64x1024xbf16, #tpu.memory_space<vmem>>, %arg3: memref<1x1024xbf16, #tpu.memory_space<vmem>>, %arg4: memref<1024x512xbf16, #tpu.memory_space<vmem>>, %arg5: memref<1x512xbf16, #tpu.memory_space<vmem>>, %arg6: memref<512x128xbf16, #tpu.memory_space<vmem>>, %arg7: memref<1x128xbf16, #tpu.memory_space<vmem>>, %arg8: memref<128x128xbf16, #tpu.memory_space<vmem>>, %arg9: memref<1x128xf32, #tpu.memory_space<vmem>>, %arg10: memref<8x128xf32, #tpu.memory_space<vmem>>) attributes {dimension_semantics = [#tpu.dimension_semantics<parallel>], iteration_bounds = array<i64: 1>, scalar_prefetch = 0 : i64, scratch_operands = 0 : i64, tpu.core_type = #tpu.core_type<tc>, window_params = [{transform_indices = @transform_0, window_bounds = array<i64: 8, 64>}, {pipeline_mode = #tpu.pipeline_mode<synchronous>, transform_indices = @transform_1, window_bounds = array<i64: 64, 1024>}, {pipeline_mode = #tpu.pipeline_mode<synchronous>, transform_indices = @transform_2, window_bounds = array<i64: 1, 1024>}, {pipeline_mode = #tpu.pipeline_mode<synchronous>, transform_indices = @transform_3, window_bounds = array<i64: 1024, 512>}, {pipeline_mode = #tpu.pipeline_mode<synchronous>, transform_indices = @transform_4, window_bounds = array<i64: 1, 512>}, {pipeline_mode = #tpu.pipeline_mode<synchronous>, transform_indices = @transform_5, window_bounds = array<i64: 512, 128>}, {pipeline_mode = #tpu.pipeline_mode<synchronous>, transform_indices = @transform_6, window_bounds = array<i64: 1, 128>}, {pipeline_mode = #tpu.pipeline_mode<synchronous>, transform_indices = @transform_7, window_bounds = array<i64: 128, 128>}, {pipeline_mode = #tpu.pipeline_mode<synchronous>, transform_indices = @transform_8, window_bounds = array<i64: 1, 128>}, {transform_indices = @transform_9, window_bounds = array<i64: 8, 128>}]} {
    %c0 = arith.constant 0 : index
    %c0_0 = arith.constant 0 : index
    %0 = vector.load %arg1[%c0, %c0_0] : memref<8x64xf32, #tpu.memory_space<vmem>>, vector<8x64xf32>
    %1 = arith.truncf %0 : vector<8x64xf32> to vector<8x64xbf16>
    %c0_1 = arith.constant 0 : index
    %c0_2 = arith.constant 0 : index
    %2 = vector.load %arg2[%c0_1, %c0_2] : memref<64x1024xbf16, #tpu.memory_space<vmem>>, vector<64x1024xbf16>
    %cst = arith.constant dense<0.000000e+00> : vector<8x1024xf32>
    %3 = tpu.matmul %1, %2, %cst {dimension_numbers = #tpu.dot_dimension_numbers<[1], [0], [0], [1], [0, 0, 1, 1], [], []>} : vector<8x64xbf16>, vector<64x1024xbf16>, vector<8x1024xf32> -> vector<8x1024xf32>
    %4 = arith.truncf %3 : vector<8x1024xf32> to vector<8x1024xbf16>
    %c0_3 = arith.constant 0 : index
    %c0_4 = arith.constant 0 : index
    %5 = vector.load %arg3[%c0_3, %c0_4] : memref<1x1024xbf16, #tpu.memory_space<vmem>>, vector<1x1024xbf16>
    %6 = vector.broadcast %5 : vector<1x1024xbf16> to vector<8x1024xbf16>
    %7 = arith.addf %4, %6 : vector<8x1024xbf16>
    %cst_5 = arith.constant 0.000000e+00 : bf16
    %8 = vector.broadcast %cst_5 : bf16 to vector<8x1024xbf16>
    %9 = arith.maximumf %7, %8 : vector<8x1024xbf16>
    %c0_6 = arith.constant 0 : index
    %c0_7 = arith.constant 0 : index
    %10 = vector.load %arg4[%c0_6, %c0_7] : memref<1024x512xbf16, #tpu.memory_space<vmem>>, vector<1024x512xbf16>
    %cst_8 = arith.constant dense<0.000000e+00> : vector<8x512xf32>
    %11 = tpu.matmul %9, %10, %cst_8 {dimension_numbers = #tpu.dot_dimension_numbers<[1], [0], [0], [1], [0, 0, 1, 1], [], []>} : vector<8x1024xbf16>, vector<1024x512xbf16>, vector<8x512xf32> -> vector<8x512xf32>
    %12 = arith.truncf %11 : vector<8x512xf32> to vector<8x512xbf16>
    %c0_9 = arith.constant 0 : index
    %c0_10 = arith.constant 0 : index
    %13 = vector.load %arg5[%c0_9, %c0_10] : memref<1x512xbf16, #tpu.memory_space<vmem>>, vector<1x512xbf16>
    %14 = vector.broadcast %13 : vector<1x512xbf16> to vector<8x512xbf16>
    %15 = arith.addf %12, %14 : vector<8x512xbf16>
    %cst_11 = arith.constant 0.000000e+00 : bf16
    %16 = vector.broadcast %cst_11 : bf16 to vector<8x512xbf16>
    %17 = arith.maximumf %15, %16 : vector<8x512xbf16>
    %c0_12 = arith.constant 0 : index
    %c0_13 = arith.constant 0 : index
    %18 = vector.load %arg6[%c0_12, %c0_13] : memref<512x128xbf16, #tpu.memory_space<vmem>>, vector<512x128xbf16>
    %cst_14 = arith.constant dense<0.000000e+00> : vector<8x128xf32>
    %19 = tpu.matmul %17, %18, %cst_14 {dimension_numbers = #tpu.dot_dimension_numbers<[1], [0], [0], [1], [0, 0, 1, 1], [], []>} : vector<8x512xbf16>, vector<512x128xbf16>, vector<8x128xf32> -> vector<8x128xf32>
    %20 = arith.truncf %19 : vector<8x128xf32> to vector<8x128xbf16>
    %c0_15 = arith.constant 0 : index
    %c0_16 = arith.constant 0 : index
    %21 = vector.load %arg7[%c0_15, %c0_16] : memref<1x128xbf16, #tpu.memory_space<vmem>>, vector<1x128xbf16>
    %22 = vector.broadcast %21 : vector<1x128xbf16> to vector<8x128xbf16>
    %23 = arith.addf %20, %22 : vector<8x128xbf16>
    %cst_17 = arith.constant 0.000000e+00 : bf16
    %24 = vector.broadcast %cst_17 : bf16 to vector<8x128xbf16>
    %25 = arith.maximumf %23, %24 : vector<8x128xbf16>
    %c0_18 = arith.constant 0 : index
    %c0_19 = arith.constant 0 : index
    %26 = vector.load %arg8[%c0_18, %c0_19] : memref<128x128xbf16, #tpu.memory_space<vmem>>, vector<128x128xbf16>
    %cst_20 = arith.constant dense<0.000000e+00> : vector<8x128xf32>
    %27 = tpu.matmul %25, %26, %cst_20 {dimension_numbers = #tpu.dot_dimension_numbers<[1], [0], [0], [1], [0, 0, 1, 1], [], []>} : vector<8x128xbf16>, vector<128x128xbf16>, vector<8x128xf32> -> vector<8x128xf32>
    %c0_21 = arith.constant 0 : index
    %c0_22 = arith.constant 0 : index
    %28 = vector.load %arg9[%c0_21, %c0_22] : memref<1x128xf32, #tpu.memory_space<vmem>>, vector<1x128xf32>
    %29 = vector.broadcast %28 : vector<1x128xf32> to vector<8x128xf32>
    %30 = arith.addf %27, %29 : vector<8x128xf32>
    %c0_23 = arith.constant 0 : index
    %c0_24 = arith.constant 0 : index
    %31 = vector.load %arg10[%c0_23, %c0_24] : memref<8x128xf32, #tpu.memory_space<vmem>>, vector<8x128xf32>
    tpu.vector_store %arg10[%c0_23, %c0_24], %30 {strides = array<i32>} : memref<8x128xf32, #tpu.memory_space<vmem>>, vector<8x128xf32>,
    return
  }
  func.func @transform_0(%arg0: i32) -> (i32, i32) {
    %c0_i32 = arith.constant 0 : i32
    %c0_i32_0 = arith.constant 0 : i32
    return %arg0, %c0_i32 : i32, i32
  }
  func.func @transform_1(%arg0: i32) -> (i32, i32) {
    %c0_i32 = arith.constant 0 : i32
    %c0_i32_0 = arith.constant 0 : i32
    %c0_i32_1 = arith.constant 0 : i32
    return %c0_i32, %c0_i32_0 : i32, i32
  }
  func.func @transform_2(%arg0: i32) -> (i32, i32) {
    %c0_i32 = arith.constant 0 : i32
    %c0_i32_0 = arith.constant 0 : i32
    %c0_i32_1 = arith.constant 0 : i32
    return %c0_i32, %c0_i32_0 : i32, i32
  }
  func.func @transform_3(%arg0: i32) -> (i32, i32) {
    %c0_i32 = arith.constant 0 : i32
    %c0_i32_0 = arith.constant 0 : i32
    %c0_i32_1 = arith.constant 0 : i32
    return %c0_i32, %c0_i32_0 : i32, i32
  }
  func.func @transform_4(%arg0: i32) -> (i32, i32) {
    %c0_i32 = arith.constant 0 : i32
    %c0_i32_0 = arith.constant 0 : i32
    %c0_i32_1 = arith.constant 0 : i32
    return %c0_i32, %c0_i32_0 : i32, i32
  }
  func.func @transform_5(%arg0: i32) -> (i32, i32) {
    %c0_i32 = arith.constant 0 : i32
    %c0_i32_0 = arith.constant 0 : i32
    %c0_i32_1 = arith.constant 0 : i32
    return %c0_i32, %c0_i32_0 : i32, i32
  }
  func.func @transform_6(%arg0: i32) -> (i32, i32) {
    %c0_i32 = arith.constant 0 : i32
    %c0_i32_0 = arith.constant 0 : i32
    %c0_i32_1 = arith.constant 0 : i32
    return %c0_i32, %c0_i32_0 : i32, i32
  }
  func.func @transform_7(%arg0: i32) -> (i32, i32) {
    %c0_i32 = arith.constant 0 : i32
    %c0_i32_0 = arith.constant 0 : i32
    %c0_i32_1 = arith.constant 0 : i32
    return %c0_i32, %c0_i32_0 : i32, i32
  }
  func.func @transform_8(%arg0: i32) -> (i32, i32) {
    %c0_i32 = arith.constant 0 : i32
    %c0_i32_0 = arith.constant 0 : i32
    %c0_i32_1 = arith.constant 0 : i32
    return %c0_i32, %c0_i32_0 : i32, i32
  }
  func.func @transform_9(%arg0: i32) -> (i32, i32) {
    %c0_i32 = arith.constant 0 : i32
    %c0_i32_0 = arith.constant 0 : i32
    return %arg0, %c0_i32 : i32, i32
  }
}

</mosaic_0001>

<llo_original>
// kernel: simple_mlp_forward.1
$region0: #{simple_mlp_forward.1}
  #allocation0 [shape = 'u32[]', space=smem, size = 0x4, offset = 0x4, fixed_abs, tag = 'smem constant byte address 0x4 - core index']
  #allocation1 [shape = 'u32[72,128]{1,0:T(1,128)}', space=vmem, size = 0x9000, scoped, tag = 'internal scratch']
  %s0 = inlined_call_operand.hbm [shape: f32[8,64], index: 0, kind: input, shape index: {}]
  %s1 = inlined_call_operand.hbm [shape: bf16[64,1024], index: 1, kind: input, shape index: {}]
  %s2 = inlined_call_operand.hbm [shape: bf16[1,1024], index: 2, kind: input, shape index: {}]
  %s3 = inlined_call_operand.hbm [shape: bf16[1024,512], index: 3, kind: input, shape index: {}]
  %s4 = inlined_call_operand.hbm [shape: bf16[1,512], index: 4, kind: input, shape index: {}]
  %s5 = inlined_call_operand.hbm [shape: bf16[512,128], index: 5, kind: input, shape index: {}]
  %s6 = inlined_call_operand.vmem [shape: bf16[1,128], index: 6, kind: input, shape index: {}]
  %s7 = inlined_call_operand.hbm [shape: bf16[128,128], index: 7, kind: input, shape index: {}]
  %s8 = inlined_call_operand.vmem [shape: f32[1,128], index: 8, kind: input, shape index: {}]
  %s9 = inlined_call_operand.hbm [shape: f32[8,128], index: 9, kind: output, shape index: {}]
  %s10 = sld [smem:[#allocation0]]
  $region74: #{simple_mlp_forward.1} parent=0
    _
  %s12 = ssub.s32 1, %s10
  %s13 = scalar_select 0, %s12, %s10
  $region1: #{simple_mlp_forward.1} parent=0
    #allocation2 [shape = 'u8[4096]{0}', space=vmem, size = 0x1000, scoped, tag = 'input window, operand 0, single buffered']
    #allocation3 [shape = 's32[1]{0}', space=sflag, size = 0x4, scoped, tag = 'scoped memory for simple_mlp_forward.1']
    #allocation4 [shape = 's32[1]{0}', space=sflag, size = 0x4, scoped, tag = 'scoped memory for simple_mlp_forward.1']
    #allocation5 [shape = 'u8[131072]{0}', space=vmem, size = 0x20000, scoped, tag = 'input window, operand 1, single buffered']
    #allocation6 [shape = 's32[1]{0}', space=sflag, size = 0x4, scoped, tag = 'scoped memory for simple_mlp_forward.1']
    #allocation7 [shape = 'u8[4096]{0}', space=vmem, size = 0x1000, scoped, tag = 'input window, operand 2, single buffered']
    #allocation8 [shape = 'u8[1048576]{0}', space=vmem, size = 0x100000, scoped, tag = 'input window, operand 3, single buffered']
    #allocation9 [shape = 's32[1]{0}', space=sflag, size = 0x4, scoped, tag = 'scoped memory for simple_mlp_forward.1']
    #allocation10 [shape = 'u8[2048]{0}', space=vmem, size = 0x800, scoped, tag = 'input window, operand 4, single buffered']
    #allocation11 [shape = 'u8[131072]{0}', space=vmem, size = 0x20000, scoped, tag = 'input window, operand 5, single buffered']
    #allocation12 [shape = 's32[1]{0}', space=sflag, size = 0x4, scoped, tag = 'scoped memory for simple_mlp_forward.1']
    #allocation13 [shape = 'u8[32768]{0}', space=vmem, size = 0x8000, scoped, tag = 'input window, operand 7, single buffered']
    #allocation14 [shape = 'u8[4096]{0}', space=vmem, size = 0x1000, scoped, tag = 'output window, operand 0, single buffered']
    %14 = vsyncpa [#allocation3], 0
    %15 = vsyncpa [#allocation6], 0
    %16 = vsyncpa [#allocation9], 0
    %17 = vsyncpa [#allocation12], 0
    %18 = vsyncpa [#allocation4], 0
    // Predicated region
    $region2: #{simple_mlp_forward.1} parent=1 // pred_check
      _
    $region3: #{simple_mlp_forward.1} parent=1 // pred_check_branch
      %20 = sbr.rel (0) target = $region5
    $region4: #{simple_mlp_forward.1} parent=1 // pred_region
      %22 = vsyncadd [#allocation3], 0
      %s24 = sshll.u32 %s0, 4
      %s25 = int_to_ptr.hbm [resolvable:$true] %s24
      %s26 = sshll.u32 [#allocation2], 4
      %s27 = int_to_ptr.vmem [resolvable:$true] %s26
      %29 = dma.hbm_to_vmem [thread:$0]  %s25, 128, %s27, [#allocation3]
    $region5: #{simple_mlp_forward.1} parent=1 // pred_fallthru
      _
    // Predicated region
    $region6: #{simple_mlp_forward.1} parent=1 // pred_check
      _
    $region7: #{simple_mlp_forward.1} parent=1 // pred_check_branch
      %31 = sbr.rel (0) target = $region9
    $region8: #{simple_mlp_forward.1} parent=1 // pred_region
      %33 = vsyncadd [#allocation6], 0
      %s34 = sshll.u32 %s1, 4
      %s35 = int_to_ptr.hbm [resolvable:$true] %s34
      %s36 = sshll.u32 [#allocation5], 4
      %s37 = int_to_ptr.vmem [resolvable:$true] %s36
      %42 = dma.hbm_to_vmem [thread:$0]  %s35, 4096, %s37, [#allocation6], 512, 512, 32
    $region9: #{simple_mlp_forward.1} parent=1 // pred_fallthru
      _
    // Predicated region
    $region10: #{simple_mlp_forward.1} parent=1 // pred_check
      _
    $region11: #{simple_mlp_forward.1} parent=1 // pred_check_branch
      %44 = sbr.rel (0) target = $region13
    $region12: #{simple_mlp_forward.1} parent=1 // pred_region
      %46 = vsyncadd [#allocation6], 0
      %s48 = sshll.u32 %s2, 4
      %s49 = int_to_ptr.hbm [resolvable:$true] %s48
      %s50 = sshll.u32 [#allocation7], 4
      %s51 = int_to_ptr.vmem [resolvable:$true] %s50
      %53 = dma.hbm_to_vmem [thread:$0]  %s49, 128, %s51, [#allocation6]
    $region13: #{simple_mlp_forward.1} parent=1 // pred_fallthru
      _
    // Predicated region
    $region14: #{simple_mlp_forward.1} parent=1 // pred_check
      _
    $region15: #{simple_mlp_forward.1} parent=1 // pred_check_branch
      %55 = sbr.rel (0) target = $region17
    $region16: #{simple_mlp_forward.1} parent=1 // pred_region
      %57 = vsyncadd [#allocation9], 0
      %s58 = sshll.u32 %s3, 4
      %s59 = int_to_ptr.hbm [resolvable:$true] %s58
      %s60 = sshll.u32 [#allocation8], 4
      %s61 = int_to_ptr.vmem [resolvable:$true] %s60
      %66 = dma.hbm_to_vmem [thread:$0]  %s59, 32768, %s61, [#allocation9], 256, 256, 16
    $region17: #{simple_mlp_forward.1} parent=1 // pred_fallthru
      _
    // Predicated region
    $region18: #{simple_mlp_forward.1} parent=1 // pred_check
      _
    $region19: #{simple_mlp_forward.1} parent=1 // pred_check_branch
      %68 = sbr.rel (0) target = $region21
    $region20: #{simple_mlp_forward.1} parent=1 // pred_region
      %70 = vsyncadd [#allocation9], 0
      %s72 = sshll.u32 %s4, 4
      %s73 = int_to_ptr.hbm [resolvable:$true] %s72
      %s74 = sshll.u32 [#allocation10], 4
      %s75 = int_to_ptr.vmem [resolvable:$true] %s74
      %77 = dma.hbm_to_vmem [thread:$0]  %s73, 64, %s75, [#allocation9]
    $region21: #{simple_mlp_forward.1} parent=1 // pred_fallthru
      _
    // Predicated region
    $region22: #{simple_mlp_forward.1} parent=1 // pred_check
      _
    $region23: #{simple_mlp_forward.1} parent=1 // pred_check_branch
      %79 = sbr.rel (0) target = $region25
    $region24: #{simple_mlp_forward.1} parent=1 // pred_region
      %81 = vsyncadd [#allocation12], 0
      %s82 = sshll.u32 %s5, 4
      %s83 = int_to_ptr.hbm [resolvable:$true] %s82
      %s84 = sshll.u32 [#allocation11], 4
      %s85 = int_to_ptr.vmem [resolvable:$true] %s84
      %90 = dma.hbm_to_vmem [thread:$0]  %s83, 4096, %s85, [#allocation12], 64, 64, 4
    $region25: #{simple_mlp_forward.1} parent=1 // pred_fallthru
      _
    // Predicated region
    $region26: #{simple_mlp_forward.1} parent=1 // pred_check
      _
    $region27: #{simple_mlp_forward.1} parent=1 // pred_check_branch
      %92 = sbr.rel (0) target = $region29
    $region28: #{simple_mlp_forward.1} parent=1 // pred_region
      _
    $region29: #{simple_mlp_forward.1} parent=1 // pred_fallthru
      _
    // Predicated region
    $region30: #{simple_mlp_forward.1} parent=1 // pred_check
      _
    $region31: #{simple_mlp_forward.1} parent=1 // pred_check_branch
      %94 = sbr.rel (0) target = $region33
    $region32: #{simple_mlp_forward.1} parent=1 // pred_region
      %96 = vsyncadd [#allocation12], 0
      %s97 = sshll.u32 %s7, 4
      %s98 = int_to_ptr.hbm [resolvable:$true] %s97
      %s99 = sshll.u32 [#allocation13], 4
      %s100 = int_to_ptr.vmem [resolvable:$true] %s99
      %105 = dma.hbm_to_vmem [thread:$0]  %s98, 1024, %s100, [#allocation12], 64, 64, 4
    $region33: #{simple_mlp_forward.1} parent=1 // pred_fallthru
      _
    // Predicated region
    $region34: #{simple_mlp_forward.1} parent=1 // pred_check
      _
    $region35: #{simple_mlp_forward.1} parent=1 // pred_check_branch
      %107 = sbr.rel (0) target = $region37
    $region36: #{simple_mlp_forward.1} parent=1 // pred_region
      _
    $region37: #{simple_mlp_forward.1} parent=1 // pred_fallthru
      _
    // Predicated region
    $region38: #{simple_mlp_forward.1} parent=1 // pred_check
      _
    $region39: #{simple_mlp_forward.1} parent=1 // pred_check_branch
      %109 = sbr.rel (0) target = $region41
    $region40: #{simple_mlp_forward.1} parent=1 // pred_region
      %111 = dma.done [#allocation3], 128
    $region41: #{simple_mlp_forward.1} parent=1 // pred_fallthru
      _
    // Predicated region
    $region42: #{simple_mlp_forward.1} parent=1 // pred_check
      _
    $region43: #{simple_mlp_forward.1} parent=1 // pred_check_branch
      %113 = sbr.rel (0) target = $region45
    $region44: #{simple_mlp_forward.1} parent=1 // pred_region
      %115 = dma.done [#allocation6], 4096
    $region45: #{simple_mlp_forward.1} parent=1 // pred_fallthru
      _
    // Predicated region
    $region46: #{simple_mlp_forward.1} parent=1 // pred_check
      _
    $region47: #{simple_mlp_forward.1} parent=1 // pred_check_branch
      %117 = sbr.rel (0) target = $region49
    $region48: #{simple_mlp_forward.1} parent=1 // pred_region
      %119 = dma.done [#allocation6], 128
    $region49: #{simple_mlp_forward.1} parent=1 // pred_fallthru
      _
    // Predicated region
    $region50: #{simple_mlp_forward.1} parent=1 // pred_check
      _
    $region51: #{simple_mlp_forward.1} parent=1 // pred_check_branch
      %121 = sbr.rel (0) target = $region53
    $region52: #{simple_mlp_forward.1} parent=1 // pred_region
      %123 = dma.done [#allocation9], 32768
    $region53: #{simple_mlp_forward.1} parent=1 // pred_fallthru
      _
    // Predicated region
    $region54: #{simple_mlp_forward.1} parent=1 // pred_check
      _
    $region55: #{simple_mlp_forward.1} parent=1 // pred_check_branch
      %125 = sbr.rel (0) target = $region57
    $region56: #{simple_mlp_forward.1} parent=1 // pred_region
      %127 = dma.done [#allocation9], 64
    $region57: #{simple_mlp_forward.1} parent=1 // pred_fallthru
      _
    // Predicated region
    $region58: #{simple_mlp_forward.1} parent=1 // pred_check
      _
    $region59: #{simple_mlp_forward.1} parent=1 // pred_check_branch
      %129 = sbr.rel (0) target = $region61
    $region60: #{simple_mlp_forward.1} parent=1 // pred_region
      %131 = dma.done [#allocation12], 4096
    $region61: #{simple_mlp_forward.1} parent=1 // pred_fallthru
      _
    // Predicated region
    $region62: #{simple_mlp_forward.1} parent=1 // pred_check
      _
    $region63: #{simple_mlp_forward.1} parent=1 // pred_check_branch
      %133 = sbr.rel (0) target = $region65
    $region64: #{simple_mlp_forward.1} parent=1 // pred_region
      %135 = dma.done [#allocation12], 1024
    $region65: #{simple_mlp_forward.1} parent=1 // pred_fallthru
      _
    %v137 = vld [vmem:[#allocation2] sm:$0xff]
    %v138 = vpack.c.bf16 %v137, %v137
    %v139 = vld [vmem:[#allocation5] sm:$0xff]
    %v140 = vld [vmem:[#allocation5 + $0x8] sm:$0xff]
    %v141 = vld [vmem:[#allocation5 + $0x10] sm:$0xff]
    %v142 = vld [vmem:[#allocation5 + $0x18] sm:$0xff]
    %v143 = vld [vmem:[#allocation5 + $0x20] sm:$0xff]
    %v144 = vld [vmem:[#allocation5 + $0x28] sm:$0xff]
    %v145 = vld [vmem:[#allocation5 + $0x30] sm:$0xff]
    %v146 = vld [vmem:[#allocation5 + $0x38] sm:$0xff]
    %v147 = vld [vmem:[#allocation5 + $0x40] sm:$0xff]
    %v148 = vld [vmem:[#allocation5 + $0x48] sm:$0xff]
    %v149 = vld [vmem:[#allocation5 + $0x50] sm:$0xff]
    %v150 = vld [vmem:[#allocation5 + $0x58] sm:$0xff]
    %v151 = vld [vmem:[#allocation5 + $0x60] sm:$0xff]
    %v152 = vld [vmem:[#allocation5 + $0x68] sm:$0xff]
    %v153 = vld [vmem:[#allocation5 + $0x70] sm:$0xff]
    %v154 = vld [vmem:[#allocation5 + $0x78] sm:$0xff]
    %v155 = vld [vmem:[#allocation5 + $0x80] sm:$0xff]
    %v156 = vld [vmem:[#allocation5 + $0x88] sm:$0xff]
    %v157 = vld [vmem:[#allocation5 + $0x90] sm:$0xff]
    %v158 = vld [vmem:[#allocation5 + $0x98] sm:$0xff]
    %v159 = vld [vmem:[#allocation5 + $0xa0] sm:$0xff]
    %v160 = vld [vmem:[#allocation5 + $0xa8] sm:$0xff]
    %v161 = vld [vmem:[#allocation5 + $0xb0] sm:$0xff]
    %v162 = vld [vmem:[#allocation5 + $0xb8] sm:$0xff]
    %v163 = vld [vmem:[#allocation5 + $0xc0] sm:$0xff]
    %v164 = vld [vmem:[#allocation5 + $0xc8] sm:$0xff]
    %v165 = vld [vmem:[#allocation5 + $0xd0] sm:$0xff]
    %v166 = vld [vmem:[#allocation5 + $0xd8] sm:$0xff]
    %v167 = vld [vmem:[#allocation5 + $0xe0] sm:$0xff]
    %v168 = vld [vmem:[#allocation5 + $0xe8] sm:$0xff]
    %v169 = vld [vmem:[#allocation5 + $0xf0] sm:$0xff]
    %v170 = vld [vmem:[#allocation5 + $0xf8] sm:$0xff]
    %v203 = vunpack.c.l.b16 %v139
    %v204 = vunpack.c.h.b16 %v139
    %v205 = vunpack.c.l.b16 %v140
    %v206 = vunpack.c.h.b16 %v140
    %v207 = vunpack.c.l.b16 %v141
    %v208 = vunpack.c.h.b16 %v141
    %v209 = vunpack.c.l.b16 %v142
    %v210 = vunpack.c.h.b16 %v142
    %v211 = vunpack.c.l.b16 %v143
    %v212 = vunpack.c.h.b16 %v143
    %v213 = vunpack.c.l.b16 %v144
    %v214 = vunpack.c.h.b16 %v144
    %v215 = vunpack.c.l.b16 %v145
    %v216 = vunpack.c.h.b16 %v145
    %v217 = vunpack.c.l.b16 %v146
    %v218 = vunpack.c.h.b16 %v146
    %v219 = vunpack.c.l.b16 %v147
    %v220 = vunpack.c.h.b16 %v147
    %v221 = vunpack.c.l.b16 %v148
    %v222 = vunpack.c.h.b16 %v148
    %v223 = vunpack.c.l.b16 %v149
    %v224 = vunpack.c.h.b16 %v149
    %v225 = vunpack.c.l.b16 %v150
    %v226 = vunpack.c.h.b16 %v150
    %v227 = vunpack.c.l.b16 %v151
    %v228 = vunpack.c.h.b16 %v151
    %v229 = vunpack.c.l.b16 %v152
    %v230 = vunpack.c.h.b16 %v152
    %v231 = vunpack.c.l.b16 %v153
    %v232 = vunpack.c.h.b16 %v153
    %v233 = vunpack.c.l.b16 %v154
    %v234 = vunpack.c.h.b16 %v154
    %v235 = vunpack.c.l.b16 %v155
    %v236 = vunpack.c.h.b16 %v155
    %v237 = vunpack.c.l.b16 %v156
    %v238 = vunpack.c.h.b16 %v156
    %v239 = vunpack.c.l.b16 %v157
    %v240 = vunpack.c.h.b16 %v157
    %v241 = vunpack.c.l.b16 %v158
    %v242 = vunpack.c.h.b16 %v158
    %v243 = vunpack.c.l.b16 %v159
    %v244 = vunpack.c.h.b16 %v159
    %v245 = vunpack.c.l.b16 %v160
    %v246 = vunpack.c.h.b16 %v160
    %v247 = vunpack.c.l.b16 %v161
    %v248 = vunpack.c.h.b16 %v161
    %v249 = vunpack.c.l.b16 %v162
    %v250 = vunpack.c.h.b16 %v162
    %v251 = vunpack.c.l.b16 %v163
    %v252 = vunpack.c.h.b16 %v163
    %v253 = vunpack.c.l.b16 %v164
    %v254 = vunpack.c.h.b16 %v164
    %v255 = vunpack.c.l.b16 %v165
    %v256 = vunpack.c.h.b16 %v165
    %v257 = vunpack.c.l.b16 %v166
    %v258 = vunpack.c.h.b16 %v166
    %v259 = vunpack.c.l.b16 %v167
    %v260 = vunpack.c.h.b16 %v167
    %v261 = vunpack.c.l.b16 %v168
    %v262 = vunpack.c.h.b16 %v168
    %v263 = vunpack.c.l.b16 %v169
    %v264 = vunpack.c.h.b16 %v169
    %v265 = vunpack.c.l.b16 %v170
    %v266 = vunpack.c.h.b16 %v170
    %v267 = vpack.c.b16 %v211, %v203
    %v268 = vpack.c.b16 %v212, %v204
    %v269 = vpack.c.b16 %v213, %v205
    %v270 = vpack.c.b16 %v214, %v206
    %v271 = vpack.c.b16 %v215, %v207
    %v272 = vpack.c.b16 %v216, %v208
    %v273 = vpack.c.b16 %v217, %v209
    %v274 = vpack.c.b16 %v218, %v210
    %v275 = vpack.c.b16 %v227, %v219
    %v276 = vpack.c.b16 %v228, %v220
    %v277 = vpack.c.b16 %v229, %v221
    %v278 = vpack.c.b16 %v230, %v222
    %v279 = vpack.c.b16 %v231, %v223
    %v280 = vpack.c.b16 %v232, %v224
    %v281 = vpack.c.b16 %v233, %v225
    %v282 = vpack.c.b16 %v234, %v226
    %v283 = vpack.c.b16 %v243, %v235
    %v284 = vpack.c.b16 %v244, %v236
    %v285 = vpack.c.b16 %v245, %v237
    %v286 = vpack.c.b16 %v246, %v238
    %v287 = vpack.c.b16 %v247, %v239
    %v288 = vpack.c.b16 %v248, %v240
    %v289 = vpack.c.b16 %v249, %v241
    %v290 = vpack.c.b16 %v250, %v242
    %v291 = vpack.c.b16 %v259, %v251
    %v292 = vpack.c.b16 %v260, %v252
    %v293 = vpack.c.b16 %v261, %v253
    %v294 = vpack.c.b16 %v262, %v254
    %v295 = vpack.c.b16 %v263, %v255
    %v296 = vpack.c.b16 %v264, %v256
    %v297 = vpack.c.b16 %v265, %v257
    %v298 = vpack.c.b16 %v266, %v258
    %vm331 = vcmask 523264
    %v333 = vsel %vm331, %v138, 0
    %335 = vmatpush.bf16.msra.mxu0 0
    %336 = vmatpush.bf16.msra.mxu0 0
    %337 = vmatpush.bf16.msra.mxu0 0
    %338 = vmatpush.bf16.msra.mxu0 0
    %339 = vmatpush.bf16.msra.mxu0 %v291
    %340 = vmatpush.bf16.msra.mxu0 %v283
    %341 = vmatpush.bf16.msra.mxu0 %v275
    %342 = vmatpush.bf16.msra.mxu0 %v267
    %343 = vmatmul.bf16.gmra.mxu0 %v333
    %v344 = vpop.f32.mrf.mxu0
    %v345 = vadd.f32 0.0, %v344
    %v346 = vpop.f32.mrf.mxu0
    %347 = vdwg.mxu0
    %348 = vmatpush.bf16.msra.mxu0 0
    %349 = vmatpush.bf16.msra.mxu0 0
    %350 = vmatpush.bf16.msra.mxu0 0
    %351 = vmatpush.bf16.msra.mxu0 0
    %352 = vmatpush.bf16.msra.mxu0 %v292
    %353 = vmatpush.bf16.msra.mxu0 %v284
    %354 = vmatpush.bf16.msra.mxu0 %v276
    %355 = vmatpush.bf16.msra.mxu0 %v268
    %356 = vmatmul.bf16.gmra.mxu0 %v333
    %v357 = vpop.f32.mrf.mxu0
    %v358 = vadd.f32 0.0, %v357
    %v359 = vpop.f32.mrf.mxu0
    %360 = vdwg.mxu0
    %361 = vmatpush.bf16.msra.mxu0 0
    %362 = vmatpush.bf16.msra.mxu0 0
    %363 = vmatpush.bf16.msra.mxu0 0
    %364 = vmatpush.bf16.msra.mxu0 0
    %365 = vmatpush.bf16.msra.mxu0 %v293
    %366 = vmatpush.bf16.msra.mxu0 %v285
    %367 = vmatpush.bf16.msra.mxu0 %v277
    %368 = vmatpush.bf16.msra.mxu0 %v269
    %369 = vmatmul.bf16.gmra.mxu0 %v333
    %v370 = vpop.f32.mrf.mxu0
    %v371 = vadd.f32 0.0, %v370
    %v372 = vpop.f32.mrf.mxu0
    %373 = vdwg.mxu0
    %374 = vmatpush.bf16.msra.mxu0 0
    %375 = vmatpush.bf16.msra.mxu0 0
    %376 = vmatpush.bf16.msra.mxu0 0
    %377 = vmatpush.bf16.msra.mxu0 0
    %378 = vmatpush.bf16.msra.mxu0 %v294
    %379 = vmatpush.bf16.msra.mxu0 %v286
    %380 = vmatpush.bf16.msra.mxu0 %v278
    %381 = vmatpush.bf16.msra.mxu0 %v270
    %382 = vmatmul.bf16.gmra.mxu0 %v333
    %v383 = vpop.f32.mrf.mxu0
    %v384 = vadd.f32 0.0, %v383
    %v385 = vpop.f32.mrf.mxu0
    %386 = vdwg.mxu0
    %387 = vmatpush.bf16.msra.mxu0 0
    %388 = vmatpush.bf16.msra.mxu0 0
    %389 = vmatpush.bf16.msra.mxu0 0
    %390 = vmatpush.bf16.msra.mxu0 0
    %391 = vmatpush.bf16.msra.mxu0 %v295
    %392 = vmatpush.bf16.msra.mxu0 %v287
    %393 = vmatpush.bf16.msra.mxu0 %v279
    %394 = vmatpush.bf16.msra.mxu0 %v271
    %395 = vmatmul.bf16.gmra.mxu0 %v333
    %v396 = vpop.f32.mrf.mxu0
    %v397 = vadd.f32 0.0, %v396
    %v398 = vpop.f32.mrf.mxu0
    %399 = vdwg.mxu0
    %400 = vmatpush.bf16.msra.mxu0 0
    %401 = vmatpush.bf16.msra.mxu0 0
    %402 = vmatpush.bf16.msra.mxu0 0
    %403 = vmatpush.bf16.msra.mxu0 0
    %404 = vmatpush.bf16.msra.mxu0 %v296
    %405 = vmatpush.bf16.msra.mxu0 %v288
    %406 = vmatpush.bf16.msra.mxu0 %v280
    %407 = vmatpush.bf16.msra.mxu0 %v272
    %408 = vmatmul.bf16.gmra.mxu0 %v333
    %v409 = vpop.f32.mrf.mxu0
    %v410 = vadd.f32 0.0, %v409
    %v411 = vpop.f32.mrf.mxu0
    %412 = vdwg.mxu0
    %413 = vmatpush.bf16.msra.mxu0 0
    %414 = vmatpush.bf16.msra.mxu0 0
    %415 = vmatpush.bf16.msra.mxu0 0
    %416 = vmatpush.bf16.msra.mxu0 0
    %417 = vmatpush.bf16.msra.mxu0 %v297
    %418 = vmatpush.bf16.msra.mxu0 %v289
    %419 = vmatpush.bf16.msra.mxu0 %v281
    %420 = vmatpush.bf16.msra.mxu0 %v273
    %421 = vmatmul.bf16.gmra.mxu0 %v333
    %v422 = vpop.f32.mrf.mxu0
    %v423 = vadd.f32 0.0, %v422
    %v424 = vpop.f32.mrf.mxu0
    %425 = vdwg.mxu0
    %426 = vmatpush.bf16.msra.mxu0 0
    %427 = vmatpush.bf16.msra.mxu0 0
    %428 = vmatpush.bf16.msra.mxu0 0
    %429 = vmatpush.bf16.msra.mxu0 0
    %430 = vmatpush.bf16.msra.mxu0 %v298
    %431 = vmatpush.bf16.msra.mxu0 %v290
    %432 = vmatpush.bf16.msra.mxu0 %v282
    %433 = vmatpush.bf16.msra.mxu0 %v274
    %434 = vmatmul.bf16.gmra.mxu0 %v333
    %v435 = vpop.f32.mrf.mxu0
    %v436 = vadd.f32 0.0, %v435
    %v437 = vpop.f32.mrf.mxu0
    %438 = vdwg.mxu0
    %v439 = vpack.c.bf16 %v358, %v345
    %v440 = vpack.c.bf16 %v384, %v371
    %v441 = vpack.c.bf16 %v410, %v397
    %v442 = vpack.c.bf16 %v436, %v423
    %v443 = vld [vmem:[#allocation7] sm:$0xff]
    %445 = vst [vmem:[#allocation1] ss:$9 sm:$0xff] %v443
    %v446 = vld [vmem:[#allocation1] sm:$0xff]
    %v447 = vld [vmem:[#allocation1 + $0x9] sm:$0xff]
    %v448 = vld [vmem:[#allocation1 + $0x12] sm:$0xff]
    %v449 = vld [vmem:[#allocation1 + $0x1b] sm:$0xff]
    %v450 = vld [vmem:[#allocation1 + $0x24] sm:$0xff]
    %v451 = vld [vmem:[#allocation1 + $0x2d] sm:$0xff]
    %v452 = vld [vmem:[#allocation1 + $0x36] sm:$0xff]
    %v453 = vld [vmem:[#allocation1 + $0x3f] sm:$0xff]
    %v454 = vpack.i.b16 %v446, %v446
    %v456 = vperm.slane %v454, 0
    %v457 = vpack.i.b16 %v447, %v447
    %v459 = vperm.slane %v457, 0
    %v460 = vpack.i.b16 %v448, %v448
    %v462 = vperm.slane %v460, 0
    %v463 = vpack.i.b16 %v449, %v449
    %v465 = vperm.slane %v463, 0
    %v466 = vpack.i.b16 %v450, %v450
    %v468 = vperm.slane %v466, 0
    %v469 = vpack.i.b16 %v451, %v451
    %v471 = vperm.slane %v469, 0
    %v472 = vpack.i.b16 %v452, %v452
    %v474 = vperm.slane %v472, 0
    %v475 = vpack.i.b16 %v453, %v453
    %v477 = vperm.slane %v475, 0
    %v478 = vunpack.c.l.bf16 %v439
    %v479 = vunpack.c.h.bf16 %v439
    %v480 = vunpack.c.l.bf16 %v440
    %v481 = vunpack.c.h.bf16 %v440
    %v482 = vunpack.c.l.bf16 %v441
    %v483 = vunpack.c.h.bf16 %v441
    %v484 = vunpack.c.l.bf16 %v442
    %v485 = vunpack.c.h.bf16 %v442
    %v486 = vunpack.c.l.bf16 %v456
    %v487 = vunpack.c.l.bf16 %v459
    %v488 = vunpack.c.l.bf16 %v462
    %v489 = vunpack.c.l.bf16 %v465
    %v490 = vunpack.c.l.bf16 %v468
    %v491 = vunpack.c.l.bf16 %v471
    %v492 = vunpack.c.l.bf16 %v474
    %v493 = vunpack.c.l.bf16 %v477
    %v494 = vadd.f32 %v478, %v486
    %v495 = vadd.f32 %v479, %v487
    %v496 = vadd.f32 %v480, %v488
    %v497 = vadd.f32 %v481, %v489
    %v498 = vadd.f32 %v482, %v490
    %v499 = vadd.f32 %v483, %v491
    %v500 = vadd.f32 %v484, %v492
    %v501 = vadd.f32 %v485, %v493
    %v502 = vpack.c.bf16 %v495, %v494
    %v503 = vpack.c.bf16 %v497, %v496
    %v504 = vpack.c.bf16 %v499, %v498
    %v505 = vpack.c.bf16 %v501, %v500
    %v506 = vunpack.c.l.bf16 %v502
    %v507 = vunpack.c.h.bf16 %v502
    %v508 = vunpack.c.l.bf16 %v503
    %v509 = vunpack.c.h.bf16 %v503
    %v510 = vunpack.c.l.bf16 %v504
    %v511 = vunpack.c.h.bf16 %v504
    %v512 = vunpack.c.l.bf16 %v505
    %v513 = vunpack.c.h.bf16 %v505
    %v514 = vmax.f32 %v506, 0.0
    %v515 = vmax.f32 %v507, 0.0
    %v516 = vmax.f32 %v508, 0.0
    %v517 = vmax.f32 %v509, 0.0
    %v518 = vmax.f32 %v510, 0.0
    %v519 = vmax.f32 %v511, 0.0
    %v520 = vmax.f32 %v512, 0.0
    %v521 = vmax.f32 %v513, 0.0
    %v522 = vpack.c.bf16 %v514, %v514
    %v523 = vpack.c.bf16 %v515, %v515
    %v524 = vpack.c.bf16 %v516, %v516
    %v525 = vpack.c.bf16 %v517, %v517
    %v526 = vpack.c.bf16 %v518, %v518
    %v527 = vpack.c.bf16 %v519, %v519
    %v528 = vpack.c.bf16 %v520, %v520
    %v529 = vpack.c.bf16 %v521, %v521
    %v530 = vld [vmem:[#allocation8] sm:$0xff]
    %v531 = vld [vmem:[#allocation8 + $0x8] sm:$0xff]
    %v532 = vld [vmem:[#allocation8 + $0x10] sm:$0xff]
    %v533 = vld [vmem:[#allocation8 + $0x18] sm:$0xff]
    %v534 = vld [vmem:[#allocation8 + $0x20] sm:$0xff]
    %v535 = vld [vmem:[#allocation8 + $0x28] sm:$0xff]
    %v536 = vld [vmem:[#allocation8 + $0x30] sm:$0xff]
    %v537 = vld [vmem:[#allocation8 + $0x38] sm:$0xff]
    %v538 = vld [vmem:[#allocation8 + $0x40] sm:$0xff]
    %v539 = vld [vmem:[#allocation8 + $0x48] sm:$0xff]
    %v540 = vld [vmem:[#allocation8 + $0x50] sm:$0xff]
    %v541 = vld [vmem:[#allocation8 + $0x58] sm:$0xff]
    %v542 = vld [vmem:[#allocation8 + $0x60] sm:$0xff]
    %v543 = vld [vmem:[#allocation8 + $0x68] sm:$0xff]
    %v544 = vld [vmem:[#allocation8 + $0x70] sm:$0xff]
    %v545 = vld [vmem:[#allocation8 + $0x78] sm:$0xff]
    %v546 = vld [vmem:[#allocation8 + $0x80] sm:$0xff]
    %v547 = vld [vmem:[#allocation8 + $0x88] sm:$0xff]
    %v548 = vld [vmem:[#allocation8 + $0x90] sm:$0xff]
    %v549 = vld [vmem:[#allocation8 + $0x98] sm:$0xff]
    %v550 = vld [vmem:[#allocation8 + $0xa0] sm:$0xff]
    %v551 = vld [vmem:[#allocation8 + $0xa8] sm:$0xff]
    %v552 = vld [vmem:[#allocation8 + $0xb0] sm:$0xff]
    %v553 = vld [vmem:[#allocation8 + $0xb8] sm:$0xff]
    %v554 = vld [vmem:[#allocation8 + $0xc0] sm:$0xff]
    %v555 = vld [vmem:[#allocation8 + $0xc8] sm:$0xff]
    %v556 = vld [vmem:[#allocation8 + $0xd0] sm:$0xff]
    %v557 = vld [vmem:[#allocation8 + $0xd8] sm:$0xff]
    %v558 = vld [vmem:[#allocation8 + $0xe0] sm:$0xff]
    %v559 = vld [vmem:[#allocation8 + $0xe8] sm:$0xff]
    %v560 = vld [vmem:[#allocation8 + $0xf0] sm:$0xff]
    %v561 = vld [vmem:[#allocation8 + $0xf8] sm:$0xff]
    %v562 = vld [vmem:[#allocation8 + $0x100] sm:$0xff]
    %v563 = vld [vmem:[#allocation8 + $0x108] sm:$0xff]
    %v564 = vld [vmem:[#allocation8 + $0x110] sm:$0xff]
    %v565 = vld [vmem:[#allocation8 + $0x118] sm:$0xff]
    %v566 = vld [vmem:[#allocation8 + $0x120] sm:$0xff]
    %v567 = vld [vmem:[#allocation8 + $0x128] sm:$0xff]
    %v568 = vld [vmem:[#allocation8 + $0x130] sm:$0xff]
    %v569 = vld [vmem:[#allocation8 + $0x138] sm:$0xff]
    %v570 = vld [vmem:[#allocation8 + $0x140] sm:$0xff]
    %v571 = vld [vmem:[#allocation8 + $0x148] sm:$0xff]
    %v572 = vld [vmem:[#allocation8 + $0x150] sm:$0xff]
    %v573 = vld [vmem:[#allocation8 + $0x158] sm:$0xff]
    %v574 = vld [vmem:[#allocation8 + $0x160] sm:$0xff]
    %v575 = vld [vmem:[#allocation8 + $0x168] sm:$0xff]
    %v576 = vld [vmem:[#allocation8 + $0x170] sm:$0xff]
    %v577 = vld [vmem:[#allocation8 + $0x178] sm:$0xff]
    %v578 = vld [vmem:[#allocation8 + $0x180] sm:$0xff]
    %v579 = vld [vmem:[#allocation8 + $0x188] sm:$0xff]
    %v580 = vld [vmem:[#allocation8 + $0x190] sm:$0xff]
    %v581 = vld [vmem:[#allocation8 + $0x198] sm:$0xff]
    %v582 = vld [vmem:[#allocation8 + $0x1a0] sm:$0xff]
    %v583 = vld [vmem:[#allocation8 + $0x1a8] sm:$0xff]
    %v584 = vld [vmem:[#allocation8 + $0x1b0] sm:$0xff]
    %v585 = vld [vmem:[#allocation8 + $0x1b8] sm:$0xff]
    %v586 = vld [vmem:[#allocation8 + $0x1c0] sm:$0xff]
    %v587 = vld [vmem:[#allocation8 + $0x1c8] sm:$0xff]
    %v588 = vld [vmem:[#allocation8 + $0x1d0] sm:$0xff]
    %v589 = vld [vmem:[#allocation8 + $0x1d8] sm:$0xff]
    %v590 = vld [vmem:[#allocation8 + $0x1e0] sm:$0xff]
    %v591 = vld [vmem:[#allocation8 + $0x1e8] sm:$0xff]
    %v592 = vld [vmem:[#allocation8 + $0x1f0] sm:$0xff]
    %v593 = vld [vmem:[#allocation8 + $0x1f8] sm:$0xff]
    %v594 = vld [vmem:[#allocation8 + $0x200] sm:$0xff]
    %v595 = vld [vmem:[#allocation8 + $0x208] sm:$0xff]
    %v596 = vld [vmem:[#allocation8 + $0x210] sm:$0xff]
    %v597 = vld [vmem:[#allocation8 + $0x218] sm:$0xff]
    %v598 = vld [vmem:[#allocation8 + $0x220] sm:$0xff]
    %v599 = vld [vmem:[#allocation8 + $0x228] sm:$0xff]
    %v600 = vld [vmem:[#allocation8 + $0x230] sm:$0xff]
    %v601 = vld [vmem:[#allocation8 + $0x238] sm:$0xff]
    %v602 = vld [vmem:[#allocation8 + $0x240] sm:$0xff]
    %v603 = vld [vmem:[#allocation8 + $0x248] sm:$0xff]
    %v604 = vld [vmem:[#allocation8 + $0x250] sm:$0xff]
    %v605 = vld [vmem:[#allocation8 + $0x258] sm:$0xff]
    %v606 = vld [vmem:[#allocation8 + $0x260] sm:$0xff]
    %v607 = vld [vmem:[#allocation8 + $0x268] sm:$0xff]
    %v608 = vld [vmem:[#allocation8 + $0x270] sm:$0xff]
    %v609 = vld [vmem:[#allocation8 + $0x278] sm:$0xff]
    %v610 = vld [vmem:[#allocation8 + $0x280] sm:$0xff]
    %v611 = vld [vmem:[#allocation8 + $0x288] sm:$0xff]
    %v612 = vld [vmem:[#allocation8 + $0x290] sm:$0xff]
    %v613 = vld [vmem:[#allocation8 + $0x298] sm:$0xff]
    %v614 = vld [vmem:[#allocation8 + $0x2a0] sm:$0xff]
    %v615 = vld [vmem:[#allocation8 + $0x2a8] sm:$0xff]
    %v616 = vld [vmem:[#allocation8 + $0x2b0] sm:$0xff]
    %v617 = vld [vmem:[#allocation8 + $0x2b8] sm:$0xff]
    %v618 = vld [vmem:[#allocation8 + $0x2c0] sm:$0xff]
    %v619 = vld [vmem:[#allocation8 + $0x2c8] sm:$0xff]
    %v620 = vld [vmem:[#allocation8 + $0x2d0] sm:$0xff]
    %v621 = vld [vmem:[#allocation8 + $0x2d8] sm:$0xff]
    %v622 = vld [vmem:[#allocation8 + $0x2e0] sm:$0xff]
    %v623 = vld [vmem:[#allocation8 + $0x2e8] sm:$0xff]
    %v624 = vld [vmem:[#allocation8 + $0x2f0] sm:$0xff]
    %v625 = vld [vmem:[#allocation8 + $0x2f8] sm:$0xff]
    %v626 = vld [vmem:[#allocation8 + $0x300] sm:$0xff]
    %v627 = vld [vmem:[#allocation8 + $0x308] sm:$0xff]
    %v628 = vld [vmem:[#allocation8 + $0x310] sm:$0xff]
    %v629 = vld [vmem:[#allocation8 + $0x318] sm:$0xff]
    %v630 = vld [vmem:[#allocation8 + $0x320] sm:$0xff]
    %v631 = vld [vmem:[#allocation8 + $0x328] sm:$0xff]
    %v632 = vld [vmem:[#allocation8 + $0x330] sm:$0xff]
    %v633 = vld [vmem:[#allocation8 + $0x338] sm:$0xff]
    %v634 = vld [vmem:[#allocation8 + $0x340] sm:$0xff]
    %v635 = vld [vmem:[#allocation8 + $0x348] sm:$0xff]
    %v636 = vld [vmem:[#allocation8 + $0x350] sm:$0xff]
    %v637 = vld [vmem:[#allocation8 + $0x358] sm:$0xff]
    %v638 = vld [vmem:[#allocation8 + $0x360] sm:$0xff]
    %v639 = vld [vmem:[#allocation8 + $0x368] sm:$0xff]
    %v640 = vld [vmem:[#allocation8 + $0x370] sm:$0xff]
    %v641 = vld [vmem:[#allocation8 + $0x378] sm:$0xff]
    %v642 = vld [vmem:[#allocation8 + $0x380] sm:$0xff]
    %v643 = vld [vmem:[#allocation8 + $0x388] sm:$0xff]
    %v644 = vld [vmem:[#allocation8 + $0x390] sm:$0xff]
    %v645 = vld [vmem:[#allocation8 + $0x398] sm:$0xff]
    %v646 = vld [vmem:[#allocation8 + $0x3a0] sm:$0xff]
    %v647 = vld [vmem:[#allocation8 + $0x3a8] sm:$0xff]
    %v648 = vld [vmem:[#allocation8 + $0x3b0] sm:$0xff]
    %v649 = vld [vmem:[#allocation8 + $0x3b8] sm:$0xff]
    %v650 = vld [vmem:[#allocation8 + $0x3c0] sm:$0xff]
    %v651 = vld [vmem:[#allocation8 + $0x3c8] sm:$0xff]
    %v652 = vld [vmem:[#allocation8 + $0x3d0] sm:$0xff]
    %v653 = vld [vmem:[#allocation8 + $0x3d8] sm:$0xff]
    %v654 = vld [vmem:[#allocation8 + $0x3e0] sm:$0xff]
    %v655 = vld [vmem:[#allocation8 + $0x3e8] sm:$0xff]
    %v656 = vld [vmem:[#allocation8 + $0x3f0] sm:$0xff]
    %v657 = vld [vmem:[#allocation8 + $0x3f8] sm:$0xff]
    %v658 = vld [vmem:[#allocation8 + $0x400] sm:$0xff]
    %v659 = vld [vmem:[#allocation8 + $0x408] sm:$0xff]
    %v660 = vld [vmem:[#allocation8 + $0x410] sm:$0xff]
    %v661 = vld [vmem:[#allocation8 + $0x418] sm:$0xff]
    %v662 = vld [vmem:[#allocation8 + $0x420] sm:$0xff]
    %v663 = vld [vmem:[#allocation8 + $0x428] sm:$0xff]
    %v664 = vld [vmem:[#allocation8 + $0x430] sm:$0xff]
    %v665 = vld [vmem:[#allocation8 + $0x438] sm:$0xff]
    %v666 = vld [vmem:[#allocation8 + $0x440] sm:$0xff]
    %v667 = vld [vmem:[#allocation8 + $0x448] sm:$0xff]
    %v668 = vld [vmem:[#allocation8 + $0x450] sm:$0xff]
    %v669 = vld [vmem:[#allocation8 + $0x458] sm:$0xff]
    %v670 = vld [vmem:[#allocation8 + $0x460] sm:$0xff]
    %v671 = vld [vmem:[#allocation8 + $0x468] sm:$0xff]
    %v672 = vld [vmem:[#allocation8 + $0x470] sm:$0xff]
    %v673 = vld [vmem:[#allocation8 + $0x478] sm:$0xff]
    %v674 = vld [vmem:[#allocation8 + $0x480] sm:$0xff]
    %v675 = vld [vmem:[#allocation8 + $0x488] sm:$0xff]
    %v676 = vld [vmem:[#allocation8 + $0x490] sm:$0xff]
    %v677 = vld [vmem:[#allocation8 + $0x498] sm:$0xff]
    %v678 = vld [vmem:[#allocation8 + $0x4a0] sm:$0xff]
    %v679 = vld [vmem:[#allocation8 + $0x4a8] sm:$0xff]
    %v680 = vld [vmem:[#allocation8 + $0x4b0] sm:$0xff]
    %v681 = vld [vmem:[#allocation8 + $0x4b8] sm:$0xff]
    %v682 = vld [vmem:[#allocation8 + $0x4c0] sm:$0xff]
    %v683 = vld [vmem:[#allocation8 + $0x4c8] sm:$0xff]
    %v684 = vld [vmem:[#allocation8 + $0x4d0] sm:$0xff]
    %v685 = vld [vmem:[#allocation8 + $0x4d8] sm:$0xff]
    %v686 = vld [vmem:[#allocation8 + $0x4e0] sm:$0xff]
    %v687 = vld [vmem:[#allocation8 + $0x4e8] sm:$0xff]
    %v688 = vld [vmem:[#allocation8 + $0x4f0] sm:$0xff]
    %v689 = vld [vmem:[#allocation8 + $0x4f8] sm:$0xff]
    %v690 = vld [vmem:[#allocation8 + $0x500] sm:$0xff]
    %v691 = vld [vmem:[#allocation8 + $0x508] sm:$0xff]
    %v692 = vld [vmem:[#allocation8 + $0x510] sm:$0xff]
    %v693 = vld [vmem:[#allocation8 + $0x518] sm:$0xff]
    %v694 = vld [vmem:[#allocation8 + $0x520] sm:$0xff]
    %v695 = vld [vmem:[#allocation8 + $0x528] sm:$0xff]
    %v696 = vld [vmem:[#allocation8 + $0x530] sm:$0xff]
    %v697 = vld [vmem:[#allocation8 + $0x538] sm:$0xff]
    %v698 = vld [vmem:[#allocation8 + $0x540] sm:$0xff]
    %v699 = vld [vmem:[#allocation8 + $0x548] sm:$0xff]
    %v700 = vld [vmem:[#allocation8 + $0x550] sm:$0xff]
    %v701 = vld [vmem:[#allocation8 + $0x558] sm:$0xff]
    %v702 = vld [vmem:[#allocation8 + $0x560] sm:$0xff]
    %v703 = vld [vmem:[#allocation8 + $0x568] sm:$0xff]
    %v704 = vld [vmem:[#allocation8 + $0x570] sm:$0xff]
    %v705 = vld [vmem:[#allocation8 + $0x578] sm:$0xff]
    %v706 = vld [vmem:[#allocation8 + $0x580] sm:$0xff]
    %v707 = vld [vmem:[#allocation8 + $0x588] sm:$0xff]
    %v708 = vld [vmem:[#allocation8 + $0x590] sm:$0xff]
    %v709 = vld [vmem:[#allocation8 + $0x598] sm:$0xff]
    %v710 = vld [vmem:[#allocation8 + $0x5a0] sm:$0xff]
    %v711 = vld [vmem:[#allocation8 + $0x5a8] sm:$0xff]
    %v712 = vld [vmem:[#allocation8 + $0x5b0] sm:$0xff]
    %v713 = vld [vmem:[#allocation8 + $0x5b8] sm:$0xff]
    %v714 = vld [vmem:[#allocation8 + $0x5c0] sm:$0xff]
    %v715 = vld [vmem:[#allocation8 + $0x5c8] sm:$0xff]
    %v716 = vld [vmem:[#allocation8 + $0x5d0] sm:$0xff]
    %v717 = vld [vmem:[#allocation8 + $0x5d8] sm:$0xff]
    %v718 = vld [vmem:[#allocation8 + $0x5e0] sm:$0xff]
    %v719 = vld [vmem:[#allocation8 + $0x5e8] sm:$0xff]
    %v720 = vld [vmem:[#allocation8 + $0x5f0] sm:$0xff]
    %v721 = vld [vmem:[#allocation8 + $0x5f8] sm:$0xff]
    %v722 = vld [vmem:[#allocation8 + $0x600] sm:$0xff]
    %v723 = vld [vmem:[#allocation8 + $0x608] sm:$0xff]
    %v724 = vld [vmem:[#allocation8 + $0x610] sm:$0xff]
    %v725 = vld [vmem:[#allocation8 + $0x618] sm:$0xff]
    %v726 = vld [vmem:[#allocation8 + $0x620] sm:$0xff]
    %v727 = vld [vmem:[#allocation8 + $0x628] sm:$0xff]
    %v728 = vld [vmem:[#allocation8 + $0x630] sm:$0xff]
    %v729 = vld [vmem:[#allocation8 + $0x638] sm:$0xff]
    %v730 = vld [vmem:[#allocation8 + $0x640] sm:$0xff]
    %v731 = vld [vmem:[#allocation8 + $0x648] sm:$0xff]
    %v732 = vld [vmem:[#allocation8 + $0x650] sm:$0xff]
    %v733 = vld [vmem:[#allocation8 + $0x658] sm:$0xff]
    %v734 = vld [vmem:[#allocation8 + $0x660] sm:$0xff]
    %v735 = vld [vmem:[#allocation8 + $0x668] sm:$0xff]
    %v736 = vld [vmem:[#allocation8 + $0x670] sm:$0xff]
    %v737 = vld [vmem:[#allocation8 + $0x678] sm:$0xff]
    %v738 = vld [vmem:[#allocation8 + $0x680] sm:$0xff]
    %v739 = vld [vmem:[#allocation8 + $0x688] sm:$0xff]
    %v740 = vld [vmem:[#allocation8 + $0x690] sm:$0xff]
    %v741 = vld [vmem:[#allocation8 + $0x698] sm:$0xff]
    %v742 = vld [vmem:[#allocation8 + $0x6a0] sm:$0xff]
    %v743 = vld [vmem:[#allocation8 + $0x6a8] sm:$0xff]
    %v744 = vld [vmem:[#allocation8 + $0x6b0] sm:$0xff]
    %v745 = vld [vmem:[#allocation8 + $0x6b8] sm:$0xff]
    %v746 = vld [vmem:[#allocation8 + $0x6c0] sm:$0xff]
    %v747 = vld [vmem:[#allocation8 + $0x6c8] sm:$0xff]
    %v748 = vld [vmem:[#allocation8 + $0x6d0] sm:$0xff]
    %v749 = vld [vmem:[#allocation8 + $0x6d8] sm:$0xff]
    %v750 = vld [vmem:[#allocation8 + $0x6e0] sm:$0xff]
    %v751 = vld [vmem:[#allocation8 + $0x6e8] sm:$0xff]
    %v752 = vld [vmem:[#allocation8 + $0x6f0] sm:$0xff]
    %v753 = vld [vmem:[#allocation8 + $0x6f8] sm:$0xff]
    %v754 = vld [vmem:[#allocation8 + $0x700] sm:$0xff]
    %v755 = vld [vmem:[#allocation8 + $0x708] sm:$0xff]
    %v756 = vld [vmem:[#allocation8 + $0x710] sm:$0xff]
    %v757 = vld [vmem:[#allocation8 + $0x718] sm:$0xff]
    %v758 = vld [vmem:[#allocation8 + $0x720] sm:$0xff]
    %v759 = vld [vmem:[#allocation8 + $0x728] sm:$0xff]
    %v760 = vld [vmem:[#allocation8 + $0x730] sm:$0xff]
    %v761 = vld [vmem:[#allocation8 + $0x738] sm:$0xff]
    %v762 = vld [vmem:[#allocation8 + $0x740] sm:$0xff]
    %v763 = vld [vmem:[#allocation8 + $0x748] sm:$0xff]
    %v764 = vld [vmem:[#allocation8 + $0x750] sm:$0xff]
    %v765 = vld [vmem:[#allocation8 + $0x758] sm:$0xff]
    %v766 = vld [vmem:[#allocation8 + $0x760] sm:$0xff]
    %v767 = vld [vmem:[#allocation8 + $0x768] sm:$0xff]
    %v768 = vld [vmem:[#allocation8 + $0x770] sm:$0xff]
    %v769 = vld [vmem:[#allocation8 + $0x778] sm:$0xff]
    %v770 = vld [vmem:[#allocation8 + $0x780] sm:$0xff]
    %v771 = vld [vmem:[#allocation8 + $0x788] sm:$0xff]
    %v772 = vld [vmem:[#allocation8 + $0x790] sm:$0xff]
    %v773 = vld [vmem:[#allocation8 + $0x798] sm:$0xff]
    %v774 = vld [vmem:[#allocation8 + $0x7a0] sm:$0xff]
    %v775 = vld [vmem:[#allocation8 + $0x7a8] sm:$0xff]
    %v776 = vld [vmem:[#allocation8 + $0x7b0] sm:$0xff]
    %v777 = vld [vmem:[#allocation8 + $0x7b8] sm:$0xff]
    %v778 = vld [vmem:[#allocation8 + $0x7c0] sm:$0xff]
    %v779 = vld [vmem:[#allocation8 + $0x7c8] sm:$0xff]
    %v780 = vld [vmem:[#allocation8 + $0x7d0] sm:$0xff]
    %v781 = vld [vmem:[#allocation8 + $0x7d8] sm:$0xff]
    %v782 = vld [vmem:[#allocation8 + $0x7e0] sm:$0xff]
    %v783 = vld [vmem:[#allocation8 + $0x7e8] sm:$0xff]
    %v784 = vld [vmem:[#allocation8 + $0x7f0] sm:$0xff]
    %v785 = vld [vmem:[#allocation8 + $0x7f8] sm:$0xff]
    %v1042 = vunpack.c.l.b16 %v530
    %v1043 = vunpack.c.h.b16 %v530
    %v1044 = vunpack.c.l.b16 %v531
    %v1045 = vunpack.c.h.b16 %v531
    %v1046 = vunpack.c.l.b16 %v532
    %v1047 = vunpack.c.h.b16 %v532
    %v1048 = vunpack.c.l.b16 %v533
    %v1049 = vunpack.c.h.b16 %v533
    %v1050 = vunpack.c.l.b16 %v534
    %v1051 = vunpack.c.h.b16 %v534
    %v1052 = vunpack.c.l.b16 %v535
    %v1053 = vunpack.c.h.b16 %v535
    %v1054 = vunpack.c.l.b16 %v536
    %v1055 = vunpack.c.h.b16 %v536
    %v1056 = vunpack.c.l.b16 %v537
    %v1057 = vunpack.c.h.b16 %v537
    %v1058 = vunpack.c.l.b16 %v538
    %v1059 = vunpack.c.h.b16 %v538
    %v1060 = vunpack.c.l.b16 %v539
    %v1061 = vunpack.c.h.b16 %v539
    %v1062 = vunpack.c.l.b16 %v540
    %v1063 = vunpack.c.h.b16 %v540
    %v1064 = vunpack.c.l.b16 %v541
    %v1065 = vunpack.c.h.b16 %v541
    %v1066 = vunpack.c.l.b16 %v542
    %v1067 = vunpack.c.h.b16 %v542
    %v1068 = vunpack.c.l.b16 %v543
    %v1069 = vunpack.c.h.b16 %v543
    %v1070 = vunpack.c.l.b16 %v544
    %v1071 = vunpack.c.h.b16 %v544
    %v1072 = vunpack.c.l.b16 %v545
    %v1073 = vunpack.c.h.b16 %v545
    %v1074 = vunpack.c.l.b16 %v546
    %v1075 = vunpack.c.h.b16 %v546
    %v1076 = vunpack.c.l.b16 %v547
    %v1077 = vunpack.c.h.b16 %v547
    %v1078 = vunpack.c.l.b16 %v548
    %v1079 = vunpack.c.h.b16 %v548
    %v1080 = vunpack.c.l.b16 %v549
    %v1081 = vunpack.c.h.b16 %v549
    %v1082 = vunpack.c.l.b16 %v550
    %v1083 = vunpack.c.h.b16 %v550
    %v1084 = vunpack.c.l.b16 %v551
    %v1085 = vunpack.c.h.b16 %v551
    %v1086 = vunpack.c.l.b16 %v552
    %v1087 = vunpack.c.h.b16 %v552
    %v1088 = vunpack.c.l.b16 %v553
    %v1089 = vunpack.c.h.b16 %v553
    %v1090 = vunpack.c.l.b16 %v554
    %v1091 = vunpack.c.h.b16 %v554
    %v1092 = vunpack.c.l.b16 %v555
    %v1093 = vunpack.c.h.b16 %v555
    %v1094 = vunpack.c.l.b16 %v556
    %v1095 = vunpack.c.h.b16 %v556
    %v1096 = vunpack.c.l.b16 %v557
    %v1097 = vunpack.c.h.b16 %v557
    %v1098 = vunpack.c.l.b16 %v558
    %v1099 = vunpack.c.h.b16 %v558
    %v1100 = vunpack.c.l.b16 %v559
    %v1101 = vunpack.c.h.b16 %v559
    %v1102 = vunpack.c.l.b16 %v560
    %v1103 = vunpack.c.h.b16 %v560
    %v1104 = vunpack.c.l.b16 %v561
    %v1105 = vunpack.c.h.b16 %v561
    %v1106 = vunpack.c.l.b16 %v562
    %v1107 = vunpack.c.h.b16 %v562
    %v1108 = vunpack.c.l.b16 %v563
    %v1109 = vunpack.c.h.b16 %v563
    %v1110 = vunpack.c.l.b16 %v564
    %v1111 = vunpack.c.h.b16 %v564
    %v1112 = vunpack.c.l.b16 %v565
    %v1113 = vunpack.c.h.b16 %v565
    %v1114 = vunpack.c.l.b16 %v566
    %v1115 = vunpack.c.h.b16 %v566
    %v1116 = vunpack.c.l.b16 %v567
    %v1117 = vunpack.c.h.b16 %v567
    %v1118 = vunpack.c.l.b16 %v568
    %v1119 = vunpack.c.h.b16 %v568
    %v1120 = vunpack.c.l.b16 %v569
    %v1121 = vunpack.c.h.b16 %v569
    %v1122 = vunpack.c.l.b16 %v570
    %v1123 = vunpack.c.h.b16 %v570
    %v1124 = vunpack.c.l.b16 %v571
    %v1125 = vunpack.c.h.b16 %v571
    %v1126 = vunpack.c.l.b16 %v572
    %v1127 = vunpack.c.h.b16 %v572
    %v1128 = vunpack.c.l.b16 %v573
    %v1129 = vunpack.c.h.b16 %v573
    %v1130 = vunpack.c.l.b16 %v574
    %v1131 = vunpack.c.h.b16 %v574
    %v1132 = vunpack.c.l.b16 %v575
    %v1133 = vunpack.c.h.b16 %v575
    %v1134 = vunpack.c.l.b16 %v576
    %v1135 = vunpack.c.h.b16 %v576
    %v1136 = vunpack.c.l.b16 %v577
    %v1137 = vunpack.c.h.b16 %v577
    %v1138 = vunpack.c.l.b16 %v578
    %v1139 = vunpack.c.h.b16 %v578
    %v1140 = vunpack.c.l.b16 %v579
    %v1141 = vunpack.c.h.b16 %v579
    %v1142 = vunpack.c.l.b16 %v580
    %v1143 = vunpack.c.h.b16 %v580
    %v1144 = vunpack.c.l.b16 %v581
    %v1145 = vunpack.c.h.b16 %v581
    %v1146 = vunpack.c.l.b16 %v582
    %v1147 = vunpack.c.h.b16 %v582
    %v1148 = vunpack.c.l.b16 %v583
    %v1149 = vunpack.c.h.b16 %v583
    %v1150 = vunpack.c.l.b16 %v584
    %v1151 = vunpack.c.h.b16 %v584
    %v1152 = vunpack.c.l.b16 %v585
    %v1153 = vunpack.c.h.b16 %v585
    %v1154 = vunpack.c.l.b16 %v586
    %v1155 = vunpack.c.h.b16 %v586
    %v1156 = vunpack.c.l.b16 %v587
    %v1157 = vunpack.c.h.b16 %v587
    %v1158 = vunpack.c.l.b16 %v588
    %v1159 = vunpack.c.h.b16 %v588
    %v1160 = vunpack.c.l.b16 %v589
    %v1161 = vunpack.c.h.b16 %v589
    %v1162 = vunpack.c.l.b16 %v590
    %v1163 = vunpack.c.h.b16 %v590
    %v1164 = vunpack.c.l.b16 %v591
    %v1165 = vunpack.c.h.b16 %v591
    %v1166 = vunpack.c.l.b16 %v592
    %v1167 = vunpack.c.h.b16 %v592
    %v1168 = vunpack.c.l.b16 %v593
    %v1169 = vunpack.c.h.b16 %v593
    %v1170 = vunpack.c.l.b16 %v594
    %v1171 = vunpack.c.h.b16 %v594
    %v1172 = vunpack.c.l.b16 %v595
    %v1173 = vunpack.c.h.b16 %v595
    %v1174 = vunpack.c.l.b16 %v596
    %v1175 = vunpack.c.h.b16 %v596
    %v1176 = vunpack.c.l.b16 %v597
    %v1177 = vunpack.c.h.b16 %v597
    %v1178 = vunpack.c.l.b16 %v598
    %v1179 = vunpack.c.h.b16 %v598
    %v1180 = vunpack.c.l.b16 %v599
    %v1181 = vunpack.c.h.b16 %v599
    %v1182 = vunpack.c.l.b16 %v600
    %v1183 = vunpack.c.h.b16 %v600
    %v1184 = vunpack.c.l.b16 %v601
    %v1185 = vunpack.c.h.b16 %v601
    %v1186 = vunpack.c.l.b16 %v602
    %v1187 = vunpack.c.h.b16 %v602
    %v1188 = vunpack.c.l.b16 %v603
    %v1189 = vunpack.c.h.b16 %v603
    %v1190 = vunpack.c.l.b16 %v604
    %v1191 = vunpack.c.h.b16 %v604
    %v1192 = vunpack.c.l.b16 %v605
    %v1193 = vunpack.c.h.b16 %v605
    %v1194 = vunpack.c.l.b16 %v606
    %v1195 = vunpack.c.h.b16 %v606
    %v1196 = vunpack.c.l.b16 %v607
    %v1197 = vunpack.c.h.b16 %v607
    %v1198 = vunpack.c.l.b16 %v608
    %v1199 = vunpack.c.h.b16 %v608
    %v1200 = vunpack.c.l.b16 %v609
    %v1201 = vunpack.c.h.b16 %v609
    %v1202 = vunpack.c.l.b16 %v610
    %v1203 = vunpack.c.h.b16 %v610
    %v1204 = vunpack.c.l.b16 %v611
    %v1205 = vunpack.c.h.b16 %v611
    %v1206 = vunpack.c.l.b16 %v612
    %v1207 = vunpack.c.h.b16 %v612
    %v1208 = vunpack.c.l.b16 %v613
    %v1209 = vunpack.c.h.b16 %v613
    %v1210 = vunpack.c.l.b16 %v614
    %v1211 = vunpack.c.h.b16 %v614
    %v1212 = vunpack.c.l.b16 %v615
    %v1213 = vunpack.c.h.b16 %v615
    %v1214 = vunpack.c.l.b16 %v616
    %v1215 = vunpack.c.h.b16 %v616
    %v1216 = vunpack.c.l.b16 %v617
    %v1217 = vunpack.c.h.b16 %v617
    %v1218 = vunpack.c.l.b16 %v618
    %v1219 = vunpack.c.h.b16 %v618
    %v1220 = vunpack.c.l.b16 %v619
    %v1221 = vunpack.c.h.b16 %v619
    %v1222 = vunpack.c.l.b16 %v620
    %v1223 = vunpack.c.h.b16 %v620
    %v1224 = vunpack.c.l.b16 %v621
    %v1225 = vunpack.c.h.b16 %v621
    %v1226 = vunpack.c.l.b16 %v622
    %v1227 = vunpack.c.h.b16 %v622
    %v1228 = vunpack.c.l.b16 %v623
    %v1229 = vunpack.c.h.b16 %v623
    %v1230 = vunpack.c.l.b16 %v624
    %v1231 = vunpack.c.h.b16 %v624
    %v1232 = vunpack.c.l.b16 %v625
    %v1233 = vunpack.c.h.b16 %v625
    %v1234 = vunpack.c.l.b16 %v626
    %v1235 = vunpack.c.h.b16 %v626
    %v1236 = vunpack.c.l.b16 %v627
    %v1237 = vunpack.c.h.b16 %v627
    %v1238 = vunpack.c.l.b16 %v628
    %v1239 = vunpack.c.h.b16 %v628
    %v1240 = vunpack.c.l.b16 %v629
    %v1241 = vunpack.c.h.b16 %v629
    %v1242 = vunpack.c.l.b16 %v630
    %v1243 = vunpack.c.h.b16 %v630
    %v1244 = vunpack.c.l.b16 %v631
    %v1245 = vunpack.c.h.b16 %v631
    %v1246 = vunpack.c.l.b16 %v632
    %v1247 = vunpack.c.h.b16 %v632
    %v1248 = vunpack.c.l.b16 %v633
    %v1249 = vunpack.c.h.b16 %v633
    %v1250 = vunpack.c.l.b16 %v634
    %v1251 = vunpack.c.h.b16 %v634
    %v1252 = vunpack.c.l.b16 %v635
    %v1253 = vunpack.c.h.b16 %v635
    %v1254 = vunpack.c.l.b16 %v636
    %v1255 = vunpack.c.h.b16 %v636
    %v1256 = vunpack.c.l.b16 %v637
    %v1257 = vunpack.c.h.b16 %v637
    %v1258 = vunpack.c.l.b16 %v638
    %v1259 = vunpack.c.h.b16 %v638
    %v1260 = vunpack.c.l.b16 %v639
    %v1261 = vunpack.c.h.b16 %v639
    %v1262 = vunpack.c.l.b16 %v640
    %v1263 = vunpack.c.h.b16 %v640
    %v1264 = vunpack.c.l.b16 %v641
    %v1265 = vunpack.c.h.b16 %v641
    %v1266 = vunpack.c.l.b16 %v642
    %v1267 = vunpack.c.h.b16 %v642
    %v1268 = vunpack.c.l.b16 %v643
    %v1269 = vunpack.c.h.b16 %v643
    %v1270 = vunpack.c.l.b16 %v644
    %v1271 = vunpack.c.h.b16 %v644
    %v1272 = vunpack.c.l.b16 %v645
    %v1273 = vunpack.c.h.b16 %v645
    %v1274 = vunpack.c.l.b16 %v646
    %v1275 = vunpack.c.h.b16 %v646
    %v1276 = vunpack.c.l.b16 %v647
    %v1277 = vunpack.c.h.b16 %v647
    %v1278 = vunpack.c.l.b16 %v648
    %v1279 = vunpack.c.h.b16 %v648
    %v1280 = vunpack.c.l.b16 %v649
    %v1281 = vunpack.c.h.b16 %v649
    %v1282 = vunpack.c.l.b16 %v650
    %v1283 = vunpack.c.h.b16 %v650
    %v1284 = vunpack.c.l.b16 %v651
    %v1285 = vunpack.c.h.b16 %v651
    %v1286 = vunpack.c.l.b16 %v652
    %v1287 = vunpack.c.h.b16 %v652
    %v1288 = vunpack.c.l.b16 %v653
    %v1289 = vunpack.c.h.b16 %v653
    %v1290 = vunpack.c.l.b16 %v654
    %v1291 = vunpack.c.h.b16 %v654
    %v1292 = vunpack.c.l.b16 %v655
    %v1293 = vunpack.c.h.b16 %v655
    %v1294 = vunpack.c.l.b16 %v656
    %v1295 = vunpack.c.h.b16 %v656
    %v1296 = vunpack.c.l.b16 %v657
    %v1297 = vunpack.c.h.b16 %v657
    %v1298 = vunpack.c.l.b16 %v658
    %v1299 = vunpack.c.h.b16 %v658
    %v1300 = vunpack.c.l.b16 %v659
    %v1301 = vunpack.c.h.b16 %v659
    %v1302 = vunpack.c.l.b16 %v660
    %v1303 = vunpack.c.h.b16 %v660
    %v1304 = vunpack.c.l.b16 %v661
    %v1305 = vunpack.c.h.b16 %v661
    %v1306 = vunpack.c.l.b16 %v662
    %v1307 = vunpack.c.h.b16 %v662
    %v1308 = vunpack.c.l.b16 %v663
    %v1309 = vunpack.c.h.b16 %v663
    %v1310 = vunpack.c.l.b16 %v664
    %v1311 = vunpack.c.h.b16 %v664
    %v1312 = vunpack.c.l.b16 %v665
    %v1313 = vunpack.c.h.b16 %v665
    %v1314 = vunpack.c.l.b16 %v666
    %v1315 = vunpack.c.h.b16 %v666
    %v1316 = vunpack.c.l.b16 %v667
    %v1317 = vunpack.c.h.b16 %v667
    %v1318 = vunpack.c.l.b16 %v668
    %v1319 = vunpack.c.h.b16 %v668
    %v1320 = vunpack.c.l.b16 %v669
    %v1321 = vunpack.c.h.b16 %v669
    %v1322 = vunpack.c.l.b16 %v670
    %v1323 = vunpack.c.h.b16 %v670
    %v1324 = vunpack.c.l.b16 %v671
    %v1325 = vunpack.c.h.b16 %v671
    %v1326 = vunpack.c.l.b16 %v672
    %v1327 = vunpack.c.h.b16 %v672
    %v1328 = vunpack.c.l.b16 %v673
    %v1329 = vunpack.c.h.b16 %v673
    %v1330 = vunpack.c.l.b16 %v674
    %v1331 = vunpack.c.h.b16 %v674
    %v1332 = vunpack.c.l.b16 %v675
    %v1333 = vunpack.c.h.b16 %v675
    %v1334 = vunpack.c.l.b16 %v676
    %v1335 = vunpack.c.h.b16 %v676
    %v1336 = vunpack.c.l.b16 %v677
    %v1337 = vunpack.c.h.b16 %v677
    %v1338 = vunpack.c.l.b16 %v678
    %v1339 = vunpack.c.h.b16 %v678
    %v1340 = vunpack.c.l.b16 %v679
    %v1341 = vunpack.c.h.b16 %v679
    %v1342 = vunpack.c.l.b16 %v680
    %v1343 = vunpack.c.h.b16 %v680
    %v1344 = vunpack.c.l.b16 %v681
    %v1345 = vunpack.c.h.b16 %v681
    %v1346 = vunpack.c.l.b16 %v682
    %v1347 = vunpack.c.h.b16 %v682
    %v1348 = vunpack.c.l.b16 %v683
    %v1349 = vunpack.c.h.b16 %v683
    %v1350 = vunpack.c.l.b16 %v684
    %v1351 = vunpack.c.h.b16 %v684
    %v1352 = vunpack.c.l.b16 %v685
    %v1353 = vunpack.c.h.b16 %v685
    %v1354 = vunpack.c.l.b16 %v686
    %v1355 = vunpack.c.h.b16 %v686
    %v1356 = vunpack.c.l.b16 %v687
    %v1357 = vunpack.c.h.b16 %v687
    %v1358 = vunpack.c.l.b16 %v688
    %v1359 = vunpack.c.h.b16 %v688
    %v1360 = vunpack.c.l.b16 %v689
    %v1361 = vunpack.c.h.b16 %v689
    %v1362 = vunpack.c.l.b16 %v690
    %v1363 = vunpack.c.h.b16 %v690
    %v1364 = vunpack.c.l.b16 %v691
    %v1365 = vunpack.c.h.b16 %v691
    %v1366 = vunpack.c.l.b16 %v692
    %v1367 = vunpack.c.h.b16 %v692
    %v1368 = vunpack.c.l.b16 %v693
    %v1369 = vunpack.c.h.b16 %v693
    %v1370 = vunpack.c.l.b16 %v694
    %v1371 = vunpack.c.h.b16 %v694
    %v1372 = vunpack.c.l.b16 %v695
    %v1373 = vunpack.c.h.b16 %v695
    %v1374 = vunpack.c.l.b16 %v696
    %v1375 = vunpack.c.h.b16 %v696
    %v1376 = vunpack.c.l.b16 %v697
    %v1377 = vunpack.c.h.b16 %v697
    %v1378 = vunpack.c.l.b16 %v698
    %v1379 = vunpack.c.h.b16 %v698
    %v1380 = vunpack.c.l.b16 %v699
    %v1381 = vunpack.c.h.b16 %v699
    %v1382 = vunpack.c.l.b16 %v700
    %v1383 = vunpack.c.h.b16 %v700
    %v1384 = vunpack.c.l.b16 %v701
    %v1385 = vunpack.c.h.b16 %v701
    %v1386 = vunpack.c.l.b16 %v702
    %v1387 = vunpack.c.h.b16 %v702
    %v1388 = vunpack.c.l.b16 %v703
    %v1389 = vunpack.c.h.b16 %v703
    %v1390 = vunpack.c.l.b16 %v704
    %v1391 = vunpack.c.h.b16 %v704
    %v1392 = vunpack.c.l.b16 %v705
    %v1393 = vunpack.c.h.b16 %v705
    %v1394 = vunpack.c.l.b16 %v706
    %v1395 = vunpack.c.h.b16 %v706
    %v1396 = vunpack.c.l.b16 %v707
    %v1397 = vunpack.c.h.b16 %v707
    %v1398 = vunpack.c.l.b16 %v708
    %v1399 = vunpack.c.h.b16 %v708
    %v1400 = vunpack.c.l.b16 %v709
    %v1401 = vunpack.c.h.b16 %v709
    %v1402 = vunpack.c.l.b16 %v710
    %v1403 = vunpack.c.h.b16 %v710
    %v1404 = vunpack.c.l.b16 %v711
    %v1405 = vunpack.c.h.b16 %v711
    %v1406 = vunpack.c.l.b16 %v712
    %v1407 = vunpack.c.h.b16 %v712
    %v1408 = vunpack.c.l.b16 %v713
    %v1409 = vunpack.c.h.b16 %v713
    %v1410 = vunpack.c.l.b16 %v714
    %v1411 = vunpack.c.h.b16 %v714
    %v1412 = vunpack.c.l.b16 %v715
    %v1413 = vunpack.c.h.b16 %v715
    %v1414 = vunpack.c.l.b16 %v716
    %v1415 = vunpack.c.h.b16 %v716
    %v1416 = vunpack.c.l.b16 %v717
    %v1417 = vunpack.c.h.b16 %v717
    %v1418 = vunpack.c.l.b16 %v718
    %v1419 = vunpack.c.h.b16 %v718
    %v1420 = vunpack.c.l.b16 %v719
    %v1421 = vunpack.c.h.b16 %v719
    %v1422 = vunpack.c.l.b16 %v720
    %v1423 = vunpack.c.h.b16 %v720
    %v1424 = vunpack.c.l.b16 %v721
    %v1425 = vunpack.c.h.b16 %v721
    %v1426 = vunpack.c.l.b16 %v722
    %v1427 = vunpack.c.h.b16 %v722
    %v1428 = vunpack.c.l.b16 %v723
    %v1429 = vunpack.c.h.b16 %v723
    %v1430 = vunpack.c.l.b16 %v724
    %v1431 = vunpack.c.h.b16 %v724
    %v1432 = vunpack.c.l.b16 %v725
    %v1433 = vunpack.c.h.b16 %v725
    %v1434 = vunpack.c.l.b16 %v726
    %v1435 = vunpack.c.h.b16 %v726
    %v1436 = vunpack.c.l.b16 %v727
    %v1437 = vunpack.c.h.b16 %v727
    %v1438 = vunpack.c.l.b16 %v728
    %v1439 = vunpack.c.h.b16 %v728
    %v1440 = vunpack.c.l.b16 %v729
    %v1441 = vunpack.c.h.b16 %v729
    %v1442 = vunpack.c.l.b16 %v730
    %v1443 = vunpack.c.h.b16 %v730
    %v1444 = vunpack.c.l.b16 %v731
    %v1445 = vunpack.c.h.b16 %v731
    %v1446 = vunpack.c.l.b16 %v732
    %v1447 = vunpack.c.h.b16 %v732
    %v1448 = vunpack.c.l.b16 %v733
    %v1449 = vunpack.c.h.b16 %v733
    %v1450 = vunpack.c.l.b16 %v734
    %v1451 = vunpack.c.h.b16 %v734
    %v1452 = vunpack.c.l.b16 %v735
    %v1453 = vunpack.c.h.b16 %v735
    %v1454 = vunpack.c.l.b16 %v736
    %v1455 = vunpack.c.h.b16 %v736
    %v1456 = vunpack.c.l.b16 %v737
    %v1457 = vunpack.c.h.b16 %v737
    %v1458 = vunpack.c.l.b16 %v738
    %v1459 = vunpack.c.h.b16 %v738
    %v1460 = vunpack.c.l.b16 %v739
    %v1461 = vunpack.c.h.b16 %v739
    %v1462 = vunpack.c.l.b16 %v740
    %v1463 = vunpack.c.h.b16 %v740
    %v1464 = vunpack.c.l.b16 %v741
    %v1465 = vunpack.c.h.b16 %v741
    %v1466 = vunpack.c.l.b16 %v742
    %v1467 = vunpack.c.h.b16 %v742
    %v1468 = vunpack.c.l.b16 %v743
    %v1469 = vunpack.c.h.b16 %v743
    %v1470 = vunpack.c.l.b16 %v744
    %v1471 = vunpack.c.h.b16 %v744
    %v1472 = vunpack.c.l.b16 %v745
    %v1473 = vunpack.c.h.b16 %v745
    %v1474 = vunpack.c.l.b16 %v746
    %v1475 = vunpack.c.h.b16 %v746
    %v1476 = vunpack.c.l.b16 %v747
    %v1477 = vunpack.c.h.b16 %v747
    %v1478 = vunpack.c.l.b16 %v748
    %v1479 = vunpack.c.h.b16 %v748
    %v1480 = vunpack.c.l.b16 %v749
    %v1481 = vunpack.c.h.b16 %v749
    %v1482 = vunpack.c.l.b16 %v750
    %v1483 = vunpack.c.h.b16 %v750
    %v1484 = vunpack.c.l.b16 %v751
    %v1485 = vunpack.c.h.b16 %v751
    %v1486 = vunpack.c.l.b16 %v752
    %v1487 = vunpack.c.h.b16 %v752
    %v1488 = vunpack.c.l.b16 %v753
    %v1489 = vunpack.c.h.b16 %v753
    %v1490 = vunpack.c.l.b16 %v754
    %v1491 = vunpack.c.h.b16 %v754
    %v1492 = vunpack.c.l.b16 %v755
    %v1493 = vunpack.c.h.b16 %v755
    %v1494 = vunpack.c.l.b16 %v756
    %v1495 = vunpack.c.h.b16 %v756
    %v1496 = vunpack.c.l.b16 %v757
    %v1497 = vunpack.c.h.b16 %v757
    %v1498 = vunpack.c.l.b16 %v758
    %v1499 = vunpack.c.h.b16 %v758
    %v1500 = vunpack.c.l.b16 %v759
    %v1501 = vunpack.c.h.b16 %v759
    %v1502 = vunpack.c.l.b16 %v760
    %v1503 = vunpack.c.h.b16 %v760
    %v1504 = vunpack.c.l.b16 %v761
    %v1505 = vunpack.c.h.b16 %v761
    %v1506 = vunpack.c.l.b16 %v762
    %v1507 = vunpack.c.h.b16 %v762
    %v1508 = vunpack.c.l.b16 %v763
    %v1509 = vunpack.c.h.b16 %v763
    %v1510 = vunpack.c.l.b16 %v764
    %v1511 = vunpack.c.h.b16 %v764
    %v1512 = vunpack.c.l.b16 %v765
    %v1513 = vunpack.c.h.b16 %v765
    %v1514 = vunpack.c.l.b16 %v766
    %v1515 = vunpack.c.h.b16 %v766
    %v1516 = vunpack.c.l.b16 %v767
    %v1517 = vunpack.c.h.b16 %v767
    %v1518 = vunpack.c.l.b16 %v768
    %v1519 = vunpack.c.h.b16 %v768
    %v1520 = vunpack.c.l.b16 %v769
    %v1521 = vunpack.c.h.b16 %v769
    %v1522 = vunpack.c.l.b16 %v770
    %v1523 = vunpack.c.h.b16 %v770
    %v1524 = vunpack.c.l.b16 %v771
    %v1525 = vunpack.c.h.b16 %v771
    %v1526 = vunpack.c.l.b16 %v772
    %v1527 = vunpack.c.h.b16 %v772
    %v1528 = vunpack.c.l.b16 %v773
    %v1529 = vunpack.c.h.b16 %v773
    %v1530 = vunpack.c.l.b16 %v774
    %v1531 = vunpack.c.h.b16 %v774
    %v1532 = vunpack.c.l.b16 %v775
    %v1533 = vunpack.c.h.b16 %v775
    %v1534 = vunpack.c.l.b16 %v776
    %v1535 = vunpack.c.h.b16 %v776
    %v1536 = vunpack.c.l.b16 %v777
    %v1537 = vunpack.c.h.b16 %v777
    %v1538 = vunpack.c.l.b16 %v778
    %v1539 = vunpack.c.h.b16 %v778
    %v1540 = vunpack.c.l.b16 %v779
    %v1541 = vunpack.c.h.b16 %v779
    %v1542 = vunpack.c.l.b16 %v780
    %v1543 = vunpack.c.h.b16 %v780
    %v1544 = vunpack.c.l.b16 %v781
    %v1545 = vunpack.c.h.b16 %v781
    %v1546 = vunpack.c.l.b16 %v782
    %v1547 = vunpack.c.h.b16 %v782
    %v1548 = vunpack.c.l.b16 %v783
    %v1549 = vunpack.c.h.b16 %v783
    %v1550 = vunpack.c.l.b16 %v784
    %v1551 = vunpack.c.h.b16 %v784
    %v1552 = vunpack.c.l.b16 %v785
    %v1553 = vunpack.c.h.b16 %v785
    %v1554 = vpack.c.b16 %v1046, %v1042
    %v1555 = vpack.c.b16 %v1047, %v1043
    %v1556 = vpack.c.b16 %v1048, %v1044
    %v1557 = vpack.c.b16 %v1049, %v1045
    %v1558 = vpack.c.b16 %v1054, %v1050
    %v1559 = vpack.c.b16 %v1055, %v1051
    %v1560 = vpack.c.b16 %v1056, %v1052
    %v1561 = vpack.c.b16 %v1057, %v1053
    %v1562 = vpack.c.b16 %v1062, %v1058
    %v1563 = vpack.c.b16 %v1063, %v1059
    %v1564 = vpack.c.b16 %v1064, %v1060
    %v1565 = vpack.c.b16 %v1065, %v1061
    %v1566 = vpack.c.b16 %v1070, %v1066
    %v1567 = vpack.c.b16 %v1071, %v1067
    %v1568 = vpack.c.b16 %v1072, %v1068
    %v1569 = vpack.c.b16 %v1073, %v1069
    %v1570 = vpack.c.b16 %v1078, %v1074
    %v1571 = vpack.c.b16 %v1079, %v1075
    %v1572 = vpack.c.b16 %v1080, %v1076
    %v1573 = vpack.c.b16 %v1081, %v1077
    %v1574 = vpack.c.b16 %v1086, %v1082
    %v1575 = vpack.c.b16 %v1087, %v1083
    %v1576 = vpack.c.b16 %v1088, %v1084
    %v1577 = vpack.c.b16 %v1089, %v1085
    %v1578 = vpack.c.b16 %v1094, %v1090
    %v1579 = vpack.c.b16 %v1095, %v1091
    %v1580 = vpack.c.b16 %v1096, %v1092
    %v1581 = vpack.c.b16 %v1097, %v1093
    %v1582 = vpack.c.b16 %v1102, %v1098
    %v1583 = vpack.c.b16 %v1103, %v1099
    %v1584 = vpack.c.b16 %v1104, %v1100
    %v1585 = vpack.c.b16 %v1105, %v1101
    %v1586 = vpack.c.b16 %v1110, %v1106
    %v1587 = vpack.c.b16 %v1111, %v1107
    %v1588 = vpack.c.b16 %v1112, %v1108
    %v1589 = vpack.c.b16 %v1113, %v1109
    %v1590 = vpack.c.b16 %v1118, %v1114
    %v1591 = vpack.c.b16 %v1119, %v1115
    %v1592 = vpack.c.b16 %v1120, %v1116
    %v1593 = vpack.c.b16 %v1121, %v1117
    %v1594 = vpack.c.b16 %v1126, %v1122
    %v1595 = vpack.c.b16 %v1127, %v1123
    %v1596 = vpack.c.b16 %v1128, %v1124
    %v1597 = vpack.c.b16 %v1129, %v1125
    %v1598 = vpack.c.b16 %v1134, %v1130
    %v1599 = vpack.c.b16 %v1135, %v1131
    %v1600 = vpack.c.b16 %v1136, %v1132
    %v1601 = vpack.c.b16 %v1137, %v1133
    %v1602 = vpack.c.b16 %v1142, %v1138
    %v1603 = vpack.c.b16 %v1143, %v1139
    %v1604 = vpack.c.b16 %v1144, %v1140
    %v1605 = vpack.c.b16 %v1145, %v1141
    %v1606 = vpack.c.b16 %v1150, %v1146
    %v1607 = vpack.c.b16 %v1151, %v1147
    %v1608 = vpack.c.b16 %v1152, %v1148
    %v1609 = vpack.c.b16 %v1153, %v1149
    %v1610 = vpack.c.b16 %v1158, %v1154
    %v1611 = vpack.c.b16 %v1159, %v1155
    %v1612 = vpack.c.b16 %v1160, %v1156
    %v1613 = vpack.c.b16 %v1161, %v1157
    %v1614 = vpack.c.b16 %v1166, %v1162
    %v1615 = vpack.c.b16 %v1167, %v1163
    %v1616 = vpack.c.b16 %v1168, %v1164
    %v1617 = vpack.c.b16 %v1169, %v1165
    %v1618 = vpack.c.b16 %v1174, %v1170
    %v1619 = vpack.c.b16 %v1175, %v1171
    %v1620 = vpack.c.b16 %v1176, %v1172
    %v1621 = vpack.c.b16 %v1177, %v1173
    %v1622 = vpack.c.b16 %v1182, %v1178
    %v1623 = vpack.c.b16 %v1183, %v1179
    %v1624 = vpack.c.b16 %v1184, %v1180
    %v1625 = vpack.c.b16 %v1185, %v1181
    %v1626 = vpack.c.b16 %v1190, %v1186
    %v1627 = vpack.c.b16 %v1191, %v1187
    %v1628 = vpack.c.b16 %v1192, %v1188
    %v1629 = vpack.c.b16 %v1193, %v1189
    %v1630 = vpack.c.b16 %v1198, %v1194
    %v1631 = vpack.c.b16 %v1199, %v1195
    %v1632 = vpack.c.b16 %v1200, %v1196
    %v1633 = vpack.c.b16 %v1201, %v1197
    %v1634 = vpack.c.b16 %v1206, %v1202
    %v1635 = vpack.c.b16 %v1207, %v1203
    %v1636 = vpack.c.b16 %v1208, %v1204
    %v1637 = vpack.c.b16 %v1209, %v1205
    %v1638 = vpack.c.b16 %v1214, %v1210
    %v1639 = vpack.c.b16 %v1215, %v1211
    %v1640 = vpack.c.b16 %v1216, %v1212
    %v1641 = vpack.c.b16 %v1217, %v1213
    %v1642 = vpack.c.b16 %v1222, %v1218
    %v1643 = vpack.c.b16 %v1223, %v1219
    %v1644 = vpack.c.b16 %v1224, %v1220
    %v1645 = vpack.c.b16 %v1225, %v1221
    %v1646 = vpack.c.b16 %v1230, %v1226
    %v1647 = vpack.c.b16 %v1231, %v1227
    %v1648 = vpack.c.b16 %v1232, %v1228
    %v1649 = vpack.c.b16 %v1233, %v1229
    %v1650 = vpack.c.b16 %v1238, %v1234
    %v1651 = vpack.c.b16 %v1239, %v1235
    %v1652 = vpack.c.b16 %v1240, %v1236
    %v1653 = vpack.c.b16 %v1241, %v1237
    %v1654 = vpack.c.b16 %v1246, %v1242
    %v1655 = vpack.c.b16 %v1247, %v1243
    %v1656 = vpack.c.b16 %v1248, %v1244
    %v1657 = vpack.c.b16 %v1249, %v1245
    %v1658 = vpack.c.b16 %v1254, %v1250
    %v1659 = vpack.c.b16 %v1255, %v1251
    %v1660 = vpack.c.b16 %v1256, %v1252
    %v1661 = vpack.c.b16 %v1257, %v1253
    %v1662 = vpack.c.b16 %v1262, %v1258
    %v1663 = vpack.c.b16 %v1263, %v1259
    %v1664 = vpack.c.b16 %v1264, %v1260
    %v1665 = vpack.c.b16 %v1265, %v1261
    %v1666 = vpack.c.b16 %v1270, %v1266
    %v1667 = vpack.c.b16 %v1271, %v1267
    %v1668 = vpack.c.b16 %v1272, %v1268
    %v1669 = vpack.c.b16 %v1273, %v1269
    %v1670 = vpack.c.b16 %v1278, %v1274
    %v1671 = vpack.c.b16 %v1279, %v1275
    %v1672 = vpack.c.b16 %v1280, %v1276
    %v1673 = vpack.c.b16 %v1281, %v1277
    %v1674 = vpack.c.b16 %v1286, %v1282
    %v1675 = vpack.c.b16 %v1287, %v1283
    %v1676 = vpack.c.b16 %v1288, %v1284
    %v1677 = vpack.c.b16 %v1289, %v1285
    %v1678 = vpack.c.b16 %v1294, %v1290
    %v1679 = vpack.c.b16 %v1295, %v1291
    %v1680 = vpack.c.b16 %v1296, %v1292
    %v1681 = vpack.c.b16 %v1297, %v1293
    %v1682 = vpack.c.b16 %v1302, %v1298
    %v1683 = vpack.c.b16 %v1303, %v1299
    %v1684 = vpack.c.b16 %v1304, %v1300
    %v1685 = vpack.c.b16 %v1305, %v1301
    %v1686 = vpack.c.b16 %v1310, %v1306
    %v1687 = vpack.c.b16 %v1311, %v1307
    %v1688 = vpack.c.b16 %v1312, %v1308
    %v1689 = vpack.c.b16 %v1313, %v1309
    %v1690 = vpack.c.b16 %v1318, %v1314
    %v1691 = vpack.c.b16 %v1319, %v1315
    %v1692 = vpack.c.b16 %v1320, %v1316
    %v1693 = vpack.c.b16 %v1321, %v1317
    %v1694 = vpack.c.b16 %v1326, %v1322
    %v1695 = vpack.c.b16 %v1327, %v1323
    %v1696 = vpack.c.b16 %v1328, %v1324
    %v1697 = vpack.c.b16 %v1329, %v1325
    %v1698 = vpack.c.b16 %v1334, %v1330
    %v1699 = vpack.c.b16 %v1335, %v1331
    %v1700 = vpack.c.b16 %v1336, %v1332
    %v1701 = vpack.c.b16 %v1337, %v1333
    %v1702 = vpack.c.b16 %v1342, %v1338
    %v1703 = vpack.c.b16 %v1343, %v1339
    %v1704 = vpack.c.b16 %v1344, %v1340
    %v1705 = vpack.c.b16 %v1345, %v1341
    %v1706 = vpack.c.b16 %v1350, %v1346
    %v1707 = vpack.c.b16 %v1351, %v1347
    %v1708 = vpack.c.b16 %v1352, %v1348
    %v1709 = vpack.c.b16 %v1353, %v1349
    %v1710 = vpack.c.b16 %v1358, %v1354
    %v1711 = vpack.c.b16 %v1359, %v1355
    %v1712 = vpack.c.b16 %v1360, %v1356
    %v1713 = vpack.c.b16 %v1361, %v1357
    %v1714 = vpack.c.b16 %v1366, %v1362
    %v1715 = vpack.c.b16 %v1367, %v1363
    %v1716 = vpack.c.b16 %v1368, %v1364
    %v1717 = vpack.c.b16 %v1369, %v1365
    %v1718 = vpack.c.b16 %v1374, %v1370
    %v1719 = vpack.c.b16 %v1375, %v1371
    %v1720 = vpack.c.b16 %v1376, %v1372
    %v1721 = vpack.c.b16 %v1377, %v1373
    %v1722 = vpack.c.b16 %v1382, %v1378
    %v1723 = vpack.c.b16 %v1383, %v1379
    %v1724 = vpack.c.b16 %v1384, %v1380
    %v1725 = vpack.c.b16 %v1385, %v1381
    %v1726 = vpack.c.b16 %v1390, %v1386
    %v1727 = vpack.c.b16 %v1391, %v1387
    %v1728 = vpack.c.b16 %v1392, %v1388
    %v1729 = vpack.c.b16 %v1393, %v1389
    %v1730 = vpack.c.b16 %v1398, %v1394
    %v1731 = vpack.c.b16 %v1399, %v1395
    %v1732 = vpack.c.b16 %v1400, %v1396
    %v1733 = vpack.c.b16 %v1401, %v1397
    %v1734 = vpack.c.b16 %v1406, %v1402
    %v1735 = vpack.c.b16 %v1407, %v1403
    %v1736 = vpack.c.b16 %v1408, %v1404
    %v1737 = vpack.c.b16 %v1409, %v1405
    %v1738 = vpack.c.b16 %v1414, %v1410
    %v1739 = vpack.c.b16 %v1415, %v1411
    %v1740 = vpack.c.b16 %v1416, %v1412
    %v1741 = vpack.c.b16 %v1417, %v1413
    %v1742 = vpack.c.b16 %v1422, %v1418
    %v1743 = vpack.c.b16 %v1423, %v1419
    %v1744 = vpack.c.b16 %v1424, %v1420
    %v1745 = vpack.c.b16 %v1425, %v1421
    %v1746 = vpack.c.b16 %v1430, %v1426
    %v1747 = vpack.c.b16 %v1431, %v1427
    %v1748 = vpack.c.b16 %v1432, %v1428
    %v1749 = vpack.c.b16 %v1433, %v1429
    %v1750 = vpack.c.b16 %v1438, %v1434
    %v1751 = vpack.c.b16 %v1439, %v1435
    %v1752 = vpack.c.b16 %v1440, %v1436
    %v1753 = vpack.c.b16 %v1441, %v1437
    %v1754 = vpack.c.b16 %v1446, %v1442
    %v1755 = vpack.c.b16 %v1447, %v1443
    %v1756 = vpack.c.b16 %v1448, %v1444
    %v1757 = vpack.c.b16 %v1449, %v1445
    %v1758 = vpack.c.b16 %v1454, %v1450
    %v1759 = vpack.c.b16 %v1455, %v1451
    %v1760 = vpack.c.b16 %v1456, %v1452
    %v1761 = vpack.c.b16 %v1457, %v1453
    %v1762 = vpack.c.b16 %v1462, %v1458
    %v1763 = vpack.c.b16 %v1463, %v1459
    %v1764 = vpack.c.b16 %v1464, %v1460
    %v1765 = vpack.c.b16 %v1465, %v1461
    %v1766 = vpack.c.b16 %v1470, %v1466
    %v1767 = vpack.c.b16 %v1471, %v1467
    %v1768 = vpack.c.b16 %v1472, %v1468
    %v1769 = vpack.c.b16 %v1473, %v1469
    %v1770 = vpack.c.b16 %v1478, %v1474
    %v1771 = vpack.c.b16 %v1479, %v1475
    %v1772 = vpack.c.b16 %v1480, %v1476
    %v1773 = vpack.c.b16 %v1481, %v1477
    %v1774 = vpack.c.b16 %v1486, %v1482
    %v1775 = vpack.c.b16 %v1487, %v1483
    %v1776 = vpack.c.b16 %v1488, %v1484
    %v1777 = vpack.c.b16 %v1489, %v1485
    %v1778 = vpack.c.b16 %v1494, %v1490
    %v1779 = vpack.c.b16 %v1495, %v1491
    %v1780 = vpack.c.b16 %v1496, %v1492
    %v1781 = vpack.c.b16 %v1497, %v1493
    %v1782 = vpack.c.b16 %v1502, %v1498
    %v1783 = vpack.c.b16 %v1503, %v1499
    %v1784 = vpack.c.b16 %v1504, %v1500
    %v1785 = vpack.c.b16 %v1505, %v1501
    %v1786 = vpack.c.b16 %v1510, %v1506
    %v1787 = vpack.c.b16 %v1511, %v1507
    %v1788 = vpack.c.b16 %v1512, %v1508
    %v1789 = vpack.c.b16 %v1513, %v1509
    %v1790 = vpack.c.b16 %v1518, %v1514
    %v1791 = vpack.c.b16 %v1519, %v1515
    %v1792 = vpack.c.b16 %v1520, %v1516
    %v1793 = vpack.c.b16 %v1521, %v1517
    %v1794 = vpack.c.b16 %v1526, %v1522
    %v1795 = vpack.c.b16 %v1527, %v1523
    %v1796 = vpack.c.b16 %v1528, %v1524
    %v1797 = vpack.c.b16 %v1529, %v1525
    %v1798 = vpack.c.b16 %v1534, %v1530
    %v1799 = vpack.c.b16 %v1535, %v1531
    %v1800 = vpack.c.b16 %v1536, %v1532
    %v1801 = vpack.c.b16 %v1537, %v1533
    %v1802 = vpack.c.b16 %v1542, %v1538
    %v1803 = vpack.c.b16 %v1543, %v1539
    %v1804 = vpack.c.b16 %v1544, %v1540
    %v1805 = vpack.c.b16 %v1545, %v1541
    %v1806 = vpack.c.b16 %v1550, %v1546
    %v1807 = vpack.c.b16 %v1551, %v1547
    %v1808 = vpack.c.b16 %v1552, %v1548
    %v1809 = vpack.c.b16 %v1553, %v1549
    %2066 = vmatpush.bf16.msra.mxu0 %v1582
    %2067 = vmatpush.bf16.msra.mxu0 %v1578
    %2068 = vmatpush.bf16.msra.mxu0 %v1574
    %2069 = vmatpush.bf16.msra.mxu0 %v1570
    %2070 = vmatpush.bf16.msra.mxu0 %v1566
    %2071 = vmatpush.bf16.msra.mxu0 %v1562
    %2072 = vmatpush.bf16.msra.mxu0 %v1558
    %2073 = vmatpush.bf16.msra.mxu0 %v1554
    %2074 = vmatmul.bf16.gmra.mxu0 %v522
    %v2075 = vpop.f32.mrf.mxu0
    %v2076 = vadd.f32 0.0, %v2075
    %v2077 = vpop.f32.mrf.mxu0
    %2078 = vdwg.mxu0
    %2079 = vmatpush.bf16.msra.mxu0 %v1614
    %2080 = vmatpush.bf16.msra.mxu0 %v1610
    %2081 = vmatpush.bf16.msra.mxu0 %v1606
    %2082 = vmatpush.bf16.msra.mxu0 %v1602
    %2083 = vmatpush.bf16.msra.mxu0 %v1598
    %2084 = vmatpush.bf16.msra.mxu0 %v1594
    %2085 = vmatpush.bf16.msra.mxu0 %v1590
    %2086 = vmatpush.bf16.msra.mxu0 %v1586
    %2087 = vmatmul.bf16.gmra.mxu0 %v523
    %v2088 = vpop.f32.mrf.mxu0
    %v2089 = vadd.f32 %v2076, %v2088
    %v2090 = vpop.f32.mrf.mxu0
    %2091 = vdwg.mxu0
    %2092 = vmatpush.bf16.msra.mxu0 %v1646
    %2093 = vmatpush.bf16.msra.mxu0 %v1642
    %2094 = vmatpush.bf16.msra.mxu0 %v1638
    %2095 = vmatpush.bf16.msra.mxu0 %v1634
    %2096 = vmatpush.bf16.msra.mxu0 %v1630
    %2097 = vmatpush.bf16.msra.mxu0 %v1626
    %2098 = vmatpush.bf16.msra.mxu0 %v1622
    %2099 = vmatpush.bf16.msra.mxu0 %v1618
    %2100 = vmatmul.bf16.gmra.mxu0 %v524
    %v2101 = vpop.f32.mrf.mxu0
    %v2102 = vadd.f32 %v2089, %v2101
    %v2103 = vpop.f32.mrf.mxu0
    %2104 = vdwg.mxu0
    %2105 = vmatpush.bf16.msra.mxu0 %v1678
    %2106 = vmatpush.bf16.msra.mxu0 %v1674
    %2107 = vmatpush.bf16.msra.mxu0 %v1670
    %2108 = vmatpush.bf16.msra.mxu0 %v1666
    %2109 = vmatpush.bf16.msra.mxu0 %v1662
    %2110 = vmatpush.bf16.msra.mxu0 %v1658
    %2111 = vmatpush.bf16.msra.mxu0 %v1654
    %2112 = vmatpush.bf16.msra.mxu0 %v1650
    %2113 = vmatmul.bf16.gmra.mxu0 %v525
    %v2114 = vpop.f32.mrf.mxu0
    %v2115 = vadd.f32 %v2102, %v2114
    %v2116 = vpop.f32.mrf.mxu0
    %2117 = vdwg.mxu0
    %2118 = vmatpush.bf16.msra.mxu0 %v1710
    %2119 = vmatpush.bf16.msra.mxu0 %v1706
    %2120 = vmatpush.bf16.msra.mxu0 %v1702
    %2121 = vmatpush.bf16.msra.mxu0 %v1698
    %2122 = vmatpush.bf16.msra.mxu0 %v1694
    %2123 = vmatpush.bf16.msra.mxu0 %v1690
    %2124 = vmatpush.bf16.msra.mxu0 %v1686
    %2125 = vmatpush.bf16.msra.mxu0 %v1682
    %2126 = vmatmul.bf16.gmra.mxu0 %v526
    %v2127 = vpop.f32.mrf.mxu0
    %v2128 = vadd.f32 %v2115, %v2127
    %v2129 = vpop.f32.mrf.mxu0
    %2130 = vdwg.mxu0
    %2131 = vmatpush.bf16.msra.mxu0 %v1742
    %2132 = vmatpush.bf16.msra.mxu0 %v1738
    %2133 = vmatpush.bf16.msra.mxu0 %v1734
    %2134 = vmatpush.bf16.msra.mxu0 %v1730
    %2135 = vmatpush.bf16.msra.mxu0 %v1726
    %2136 = vmatpush.bf16.msra.mxu0 %v1722
    %2137 = vmatpush.bf16.msra.mxu0 %v1718
    %2138 = vmatpush.bf16.msra.mxu0 %v1714
    %2139 = vmatmul.bf16.gmra.mxu0 %v527
    %v2140 = vpop.f32.mrf.mxu0
    %v2141 = vadd.f32 %v2128, %v2140
    %v2142 = vpop.f32.mrf.mxu0
    %2143 = vdwg.mxu0
    %2144 = vmatpush.bf16.msra.mxu0 %v1774
    %2145 = vmatpush.bf16.msra.mxu0 %v1770
    %2146 = vmatpush.bf16.msra.mxu0 %v1766
    %2147 = vmatpush.bf16.msra.mxu0 %v1762
    %2148 = vmatpush.bf16.msra.mxu0 %v1758
    %2149 = vmatpush.bf16.msra.mxu0 %v1754
    %2150 = vmatpush.bf16.msra.mxu0 %v1750
    %2151 = vmatpush.bf16.msra.mxu0 %v1746
    %2152 = vmatmul.bf16.gmra.mxu0 %v528
    %v2153 = vpop.f32.mrf.mxu0
    %v2154 = vadd.f32 %v2141, %v2153
    %v2155 = vpop.f32.mrf.mxu0
    %2156 = vdwg.mxu0
    %2157 = vmatpush.bf16.msra.mxu0 %v1806
    %2158 = vmatpush.bf16.msra.mxu0 %v1802
    %2159 = vmatpush.bf16.msra.mxu0 %v1798
    %2160 = vmatpush.bf16.msra.mxu0 %v1794
    %2161 = vmatpush.bf16.msra.mxu0 %v1790
    %2162 = vmatpush.bf16.msra.mxu0 %v1786
    %2163 = vmatpush.bf16.msra.mxu0 %v1782
    %2164 = vmatpush.bf16.msra.mxu0 %v1778
    %2165 = vmatmul.bf16.gmra.mxu0 %v529
    %v2166 = vpop.f32.mrf.mxu0
    %v2167 = vadd.f32 %v2154, %v2166
    %v2168 = vpop.f32.mrf.mxu0
    %2169 = vdwg.mxu0
    %2170 = vmatpush.bf16.msra.mxu0 %v1583
    %2171 = vmatpush.bf16.msra.mxu0 %v1579
    %2172 = vmatpush.bf16.msra.mxu0 %v1575
    %2173 = vmatpush.bf16.msra.mxu0 %v1571
    %2174 = vmatpush.bf16.msra.mxu0 %v1567
    %2175 = vmatpush.bf16.msra.mxu0 %v1563
    %2176 = vmatpush.bf16.msra.mxu0 %v1559
    %2177 = vmatpush.bf16.msra.mxu0 %v1555
    %2178 = vmatmul.bf16.gmra.mxu0 %v522
    %v2179 = vpop.f32.mrf.mxu0
    %v2180 = vadd.f32 0.0, %v2179
    %v2181 = vpop.f32.mrf.mxu0
    %2182 = vdwg.mxu0
    %2183 = vmatpush.bf16.msra.mxu0 %v1615
    %2184 = vmatpush.bf16.msra.mxu0 %v1611
    %2185 = vmatpush.bf16.msra.mxu0 %v1607
    %2186 = vmatpush.bf16.msra.mxu0 %v1603
    %2187 = vmatpush.bf16.msra.mxu0 %v1599
    %2188 = vmatpush.bf16.msra.mxu0 %v1595
    %2189 = vmatpush.bf16.msra.mxu0 %v1591
    %2190 = vmatpush.bf16.msra.mxu0 %v1587
    %2191 = vmatmul.bf16.gmra.mxu0 %v523
    %v2192 = vpop.f32.mrf.mxu0
    %v2193 = vadd.f32 %v2180, %v2192
    %v2194 = vpop.f32.mrf.mxu0
    %2195 = vdwg.mxu0
    %2196 = vmatpush.bf16.msra.mxu0 %v1647
    %2197 = vmatpush.bf16.msra.mxu0 %v1643
    %2198 = vmatpush.bf16.msra.mxu0 %v1639
    %2199 = vmatpush.bf16.msra.mxu0 %v1635
    %2200 = vmatpush.bf16.msra.mxu0 %v1631
    %2201 = vmatpush.bf16.msra.mxu0 %v1627
    %2202 = vmatpush.bf16.msra.mxu0 %v1623
    %2203 = vmatpush.bf16.msra.mxu0 %v1619
    %2204 = vmatmul.bf16.gmra.mxu0 %v524
    %v2205 = vpop.f32.mrf.mxu0
    %v2206 = vadd.f32 %v2193, %v2205
    %v2207 = vpop.f32.mrf.mxu0
    %2208 = vdwg.mxu0
    %2209 = vmatpush.bf16.msra.mxu0 %v1679
    %2210 = vmatpush.bf16.msra.mxu0 %v1675
    %2211 = vmatpush.bf16.msra.mxu0 %v1671
    %2212 = vmatpush.bf16.msra.mxu0 %v1667
    %2213 = vmatpush.bf16.msra.mxu0 %v1663
    %2214 = vmatpush.bf16.msra.mxu0 %v1659
    %2215 = vmatpush.bf16.msra.mxu0 %v1655
    %2216 = vmatpush.bf16.msra.mxu0 %v1651
    %2217 = vmatmul.bf16.gmra.mxu0 %v525
    %v2218 = vpop.f32.mrf.mxu0
    %v2219 = vadd.f32 %v2206, %v2218
    %v2220 = vpop.f32.mrf.mxu0
    %2221 = vdwg.mxu0
    %2222 = vmatpush.bf16.msra.mxu0 %v1711
    %2223 = vmatpush.bf16.msra.mxu0 %v1707
    %2224 = vmatpush.bf16.msra.mxu0 %v1703
    %2225 = vmatpush.bf16.msra.mxu0 %v1699
    %2226 = vmatpush.bf16.msra.mxu0 %v1695
    %2227 = vmatpush.bf16.msra.mxu0 %v1691
    %2228 = vmatpush.bf16.msra.mxu0 %v1687
    %2229 = vmatpush.bf16.msra.mxu0 %v1683
    %2230 = vmatmul.bf16.gmra.mxu0 %v526
    %v2231 = vpop.f32.mrf.mxu0
    %v2232 = vadd.f32 %v2219, %v2231
    %v2233 = vpop.f32.mrf.mxu0
    %2234 = vdwg.mxu0
    %2235 = vmatpush.bf16.msra.mxu0 %v1743
    %2236 = vmatpush.bf16.msra.mxu0 %v1739
    %2237 = vmatpush.bf16.msra.mxu0 %v1735
    %2238 = vmatpush.bf16.msra.mxu0 %v1731
    %2239 = vmatpush.bf16.msra.mxu0 %v1727
    %2240 = vmatpush.bf16.msra.mxu0 %v1723
    %2241 = vmatpush.bf16.msra.mxu0 %v1719
    %2242 = vmatpush.bf16.msra.mxu0 %v1715
    %2243 = vmatmul.bf16.gmra.mxu0 %v527
    %v2244 = vpop.f32.mrf.mxu0
    %v2245 = vadd.f32 %v2232, %v2244
    %v2246 = vpop.f32.mrf.mxu0
    %2247 = vdwg.mxu0
    %2248 = vmatpush.bf16.msra.mxu0 %v1775
    %2249 = vmatpush.bf16.msra.mxu0 %v1771
    %2250 = vmatpush.bf16.msra.mxu0 %v1767
    %2251 = vmatpush.bf16.msra.mxu0 %v1763
    %2252 = vmatpush.bf16.msra.mxu0 %v1759
    %2253 = vmatpush.bf16.msra.mxu0 %v1755
    %2254 = vmatpush.bf16.msra.mxu0 %v1751
    %2255 = vmatpush.bf16.msra.mxu0 %v1747
    %2256 = vmatmul.bf16.gmra.mxu0 %v528
    %v2257 = vpop.f32.mrf.mxu0
    %v2258 = vadd.f32 %v2245, %v2257
    %v2259 = vpop.f32.mrf.mxu0
    %2260 = vdwg.mxu0
    %2261 = vmatpush.bf16.msra.mxu0 %v1807
    %2262 = vmatpush.bf16.msra.mxu0 %v1803
    %2263 = vmatpush.bf16.msra.mxu0 %v1799
    %2264 = vmatpush.bf16.msra.mxu0 %v1795
    %2265 = vmatpush.bf16.msra.mxu0 %v1791
    %2266 = vmatpush.bf16.msra.mxu0 %v1787
    %2267 = vmatpush.bf16.msra.mxu0 %v1783
    %2268 = vmatpush.bf16.msra.mxu0 %v1779
    %2269 = vmatmul.bf16.gmra.mxu0 %v529
    %v2270 = vpop.f32.mrf.mxu0
    %v2271 = vadd.f32 %v2258, %v2270
    %v2272 = vpop.f32.mrf.mxu0
    %2273 = vdwg.mxu0
    %2274 = vmatpush.bf16.msra.mxu0 %v1584
    %2275 = vmatpush.bf16.msra.mxu0 %v1580
    %2276 = vmatpush.bf16.msra.mxu0 %v1576
    %2277 = vmatpush.bf16.msra.mxu0 %v1572
    %2278 = vmatpush.bf16.msra.mxu0 %v1568
    %2279 = vmatpush.bf16.msra.mxu0 %v1564
    %2280 = vmatpush.bf16.msra.mxu0 %v1560
    %2281 = vmatpush.bf16.msra.mxu0 %v1556
    %2282 = vmatmul.bf16.gmra.mxu0 %v522
    %v2283 = vpop.f32.mrf.mxu0
    %v2284 = vadd.f32 0.0, %v2283
    %v2285 = vpop.f32.mrf.mxu0
    %2286 = vdwg.mxu0
    %2287 = vmatpush.bf16.msra.mxu0 %v1616
    %2288 = vmatpush.bf16.msra.mxu0 %v1612
    %2289 = vmatpush.bf16.msra.mxu0 %v1608
    %2290 = vmatpush.bf16.msra.mxu0 %v1604
    %2291 = vmatpush.bf16.msra.mxu0 %v1600
    %2292 = vmatpush.bf16.msra.mxu0 %v1596
    %2293 = vmatpush.bf16.msra.mxu0 %v1592
    %2294 = vmatpush.bf16.msra.mxu0 %v1588
    %2295 = vmatmul.bf16.gmra.mxu0 %v523
    %v2296 = vpop.f32.mrf.mxu0
    %v2297 = vadd.f32 %v2284, %v2296
    %v2298 = vpop.f32.mrf.mxu0
    %2299 = vdwg.mxu0
    %2300 = vmatpush.bf16.msra.mxu0 %v1648
    %2301 = vmatpush.bf16.msra.mxu0 %v1644
    %2302 = vmatpush.bf16.msra.mxu0 %v1640
    %2303 = vmatpush.bf16.msra.mxu0 %v1636
    %2304 = vmatpush.bf16.msra.mxu0 %v1632
    %2305 = vmatpush.bf16.msra.mxu0 %v1628
    %2306 = vmatpush.bf16.msra.mxu0 %v1624
    %2307 = vmatpush.bf16.msra.mxu0 %v1620
    %2308 = vmatmul.bf16.gmra.mxu0 %v524
    %v2309 = vpop.f32.mrf.mxu0
    %v2310 = vadd.f32 %v2297, %v2309
    %v2311 = vpop.f32.mrf.mxu0
    %2312 = vdwg.mxu0
    %2313 = vmatpush.bf16.msra.mxu0 %v1680
    %2314 = vmatpush.bf16.msra.mxu0 %v1676
    %2315 = vmatpush.bf16.msra.mxu0 %v1672
    %2316 = vmatpush.bf16.msra.mxu0 %v1668
    %2317 = vmatpush.bf16.msra.mxu0 %v1664
    %2318 = vmatpush.bf16.msra.mxu0 %v1660
    %2319 = vmatpush.bf16.msra.mxu0 %v1656
    %2320 = vmatpush.bf16.msra.mxu0 %v1652
    %2321 = vmatmul.bf16.gmra.mxu0 %v525
    %v2322 = vpop.f32.mrf.mxu0
    %v2323 = vadd.f32 %v2310, %v2322
    %v2324 = vpop.f32.mrf.mxu0
    %2325 = vdwg.mxu0
    %2326 = vmatpush.bf16.msra.mxu0 %v1712
    %2327 = vmatpush.bf16.msra.mxu0 %v1708
    %2328 = vmatpush.bf16.msra.mxu0 %v1704
    %2329 = vmatpush.bf16.msra.mxu0 %v1700
    %2330 = vmatpush.bf16.msra.mxu0 %v1696
    %2331 = vmatpush.bf16.msra.mxu0 %v1692
    %2332 = vmatpush.bf16.msra.mxu0 %v1688
    %2333 = vmatpush.bf16.msra.mxu0 %v1684
    %2334 = vmatmul.bf16.gmra.mxu0 %v526
    %v2335 = vpop.f32.mrf.mxu0
    %v2336 = vadd.f32 %v2323, %v2335
    %v2337 = vpop.f32.mrf.mxu0
    %2338 = vdwg.mxu0
    %2339 = vmatpush.bf16.msra.mxu0 %v1744
    %2340 = vmatpush.bf16.msra.mxu0 %v1740
    %2341 = vmatpush.bf16.msra.mxu0 %v1736
    %2342 = vmatpush.bf16.msra.mxu0 %v1732
    %2343 = vmatpush.bf16.msra.mxu0 %v1728
    %2344 = vmatpush.bf16.msra.mxu0 %v1724
    %2345 = vmatpush.bf16.msra.mxu0 %v1720
    %2346 = vmatpush.bf16.msra.mxu0 %v1716
    %2347 = vmatmul.bf16.gmra.mxu0 %v527
    %v2348 = vpop.f32.mrf.mxu0
    %v2349 = vadd.f32 %v2336, %v2348
    %v2350 = vpop.f32.mrf.mxu0
    %2351 = vdwg.mxu0
    %2352 = vmatpush.bf16.msra.mxu0 %v1776
    %2353 = vmatpush.bf16.msra.mxu0 %v1772
    %2354 = vmatpush.bf16.msra.mxu0 %v1768
    %2355 = vmatpush.bf16.msra.mxu0 %v1764
    %2356 = vmatpush.bf16.msra.mxu0 %v1760
    %2357 = vmatpush.bf16.msra.mxu0 %v1756
    %2358 = vmatpush.bf16.msra.mxu0 %v1752
    %2359 = vmatpush.bf16.msra.mxu0 %v1748
    %2360 = vmatmul.bf16.gmra.mxu0 %v528
    %v2361 = vpop.f32.mrf.mxu0
    %v2362 = vadd.f32 %v2349, %v2361
    %v2363 = vpop.f32.mrf.mxu0
    %2364 = vdwg.mxu0
    %2365 = vmatpush.bf16.msra.mxu0 %v1808
    %2366 = vmatpush.bf16.msra.mxu0 %v1804
    %2367 = vmatpush.bf16.msra.mxu0 %v1800
    %2368 = vmatpush.bf16.msra.mxu0 %v1796
    %2369 = vmatpush.bf16.msra.mxu0 %v1792
    %2370 = vmatpush.bf16.msra.mxu0 %v1788
    %2371 = vmatpush.bf16.msra.mxu0 %v1784
    %2372 = vmatpush.bf16.msra.mxu0 %v1780
    %2373 = vmatmul.bf16.gmra.mxu0 %v529
    %v2374 = vpop.f32.mrf.mxu0
    %v2375 = vadd.f32 %v2362, %v2374
    %v2376 = vpop.f32.mrf.mxu0
    %2377 = vdwg.mxu0
    %2378 = vmatpush.bf16.msra.mxu0 %v1585
    %2379 = vmatpush.bf16.msra.mxu0 %v1581
    %2380 = vmatpush.bf16.msra.mxu0 %v1577
    %2381 = vmatpush.bf16.msra.mxu0 %v1573
    %2382 = vmatpush.bf16.msra.mxu0 %v1569
    %2383 = vmatpush.bf16.msra.mxu0 %v1565
    %2384 = vmatpush.bf16.msra.mxu0 %v1561
    %2385 = vmatpush.bf16.msra.mxu0 %v1557
    %2386 = vmatmul.bf16.gmra.mxu0 %v522
    %v2387 = vpop.f32.mrf.mxu0
    %v2388 = vadd.f32 0.0, %v2387
    %v2389 = vpop.f32.mrf.mxu0
    %2390 = vdwg.mxu0
    %2391 = vmatpush.bf16.msra.mxu0 %v1617
    %2392 = vmatpush.bf16.msra.mxu0 %v1613
    %2393 = vmatpush.bf16.msra.mxu0 %v1609
    %2394 = vmatpush.bf16.msra.mxu0 %v1605
    %2395 = vmatpush.bf16.msra.mxu0 %v1601
    %2396 = vmatpush.bf16.msra.mxu0 %v1597
    %2397 = vmatpush.bf16.msra.mxu0 %v1593
    %2398 = vmatpush.bf16.msra.mxu0 %v1589
    %2399 = vmatmul.bf16.gmra.mxu0 %v523
    %v2400 = vpop.f32.mrf.mxu0
    %v2401 = vadd.f32 %v2388, %v2400
    %v2402 = vpop.f32.mrf.mxu0
    %2403 = vdwg.mxu0
    %2404 = vmatpush.bf16.msra.mxu0 %v1649
    %2405 = vmatpush.bf16.msra.mxu0 %v1645
    %2406 = vmatpush.bf16.msra.mxu0 %v1641
    %2407 = vmatpush.bf16.msra.mxu0 %v1637
    %2408 = vmatpush.bf16.msra.mxu0 %v1633
    %2409 = vmatpush.bf16.msra.mxu0 %v1629
    %2410 = vmatpush.bf16.msra.mxu0 %v1625
    %2411 = vmatpush.bf16.msra.mxu0 %v1621
    %2412 = vmatmul.bf16.gmra.mxu0 %v524
    %v2413 = vpop.f32.mrf.mxu0
    %v2414 = vadd.f32 %v2401, %v2413
    %v2415 = vpop.f32.mrf.mxu0
    %2416 = vdwg.mxu0
    %2417 = vmatpush.bf16.msra.mxu0 %v1681
    %2418 = vmatpush.bf16.msra.mxu0 %v1677
    %2419 = vmatpush.bf16.msra.mxu0 %v1673
    %2420 = vmatpush.bf16.msra.mxu0 %v1669
    %2421 = vmatpush.bf16.msra.mxu0 %v1665
    %2422 = vmatpush.bf16.msra.mxu0 %v1661
    %2423 = vmatpush.bf16.msra.mxu0 %v1657
    %2424 = vmatpush.bf16.msra.mxu0 %v1653
    %2425 = vmatmul.bf16.gmra.mxu0 %v525
    %v2426 = vpop.f32.mrf.mxu0
    %v2427 = vadd.f32 %v2414, %v2426
    %v2428 = vpop.f32.mrf.mxu0
    %2429 = vdwg.mxu0
    %2430 = vmatpush.bf16.msra.mxu0 %v1713
    %2431 = vmatpush.bf16.msra.mxu0 %v1709
    %2432 = vmatpush.bf16.msra.mxu0 %v1705
    %2433 = vmatpush.bf16.msra.mxu0 %v1701
    %2434 = vmatpush.bf16.msra.mxu0 %v1697
    %2435 = vmatpush.bf16.msra.mxu0 %v1693
    %2436 = vmatpush.bf16.msra.mxu0 %v1689
    %2437 = vmatpush.bf16.msra.mxu0 %v1685
    %2438 = vmatmul.bf16.gmra.mxu0 %v526
    %v2439 = vpop.f32.mrf.mxu0
    %v2440 = vadd.f32 %v2427, %v2439
    %v2441 = vpop.f32.mrf.mxu0
    %2442 = vdwg.mxu0
    %2443 = vmatpush.bf16.msra.mxu0 %v1745
    %2444 = vmatpush.bf16.msra.mxu0 %v1741
    %2445 = vmatpush.bf16.msra.mxu0 %v1737
    %2446 = vmatpush.bf16.msra.mxu0 %v1733
    %2447 = vmatpush.bf16.msra.mxu0 %v1729
    %2448 = vmatpush.bf16.msra.mxu0 %v1725
    %2449 = vmatpush.bf16.msra.mxu0 %v1721
    %2450 = vmatpush.bf16.msra.mxu0 %v1717
    %2451 = vmatmul.bf16.gmra.mxu0 %v527
    %v2452 = vpop.f32.mrf.mxu0
    %v2453 = vadd.f32 %v2440, %v2452
    %v2454 = vpop.f32.mrf.mxu0
    %2455 = vdwg.mxu0
    %2456 = vmatpush.bf16.msra.mxu0 %v1777
    %2457 = vmatpush.bf16.msra.mxu0 %v1773
    %2458 = vmatpush.bf16.msra.mxu0 %v1769
    %2459 = vmatpush.bf16.msra.mxu0 %v1765
    %2460 = vmatpush.bf16.msra.mxu0 %v1761
    %2461 = vmatpush.bf16.msra.mxu0 %v1757
    %2462 = vmatpush.bf16.msra.mxu0 %v1753
    %2463 = vmatpush.bf16.msra.mxu0 %v1749
    %2464 = vmatmul.bf16.gmra.mxu0 %v528
    %v2465 = vpop.f32.mrf.mxu0
    %v2466 = vadd.f32 %v2453, %v2465
    %v2467 = vpop.f32.mrf.mxu0
    %2468 = vdwg.mxu0
    %2469 = vmatpush.bf16.msra.mxu0 %v1809
    %2470 = vmatpush.bf16.msra.mxu0 %v1805
    %2471 = vmatpush.bf16.msra.mxu0 %v1801
    %2472 = vmatpush.bf16.msra.mxu0 %v1797
    %2473 = vmatpush.bf16.msra.mxu0 %v1793
    %2474 = vmatpush.bf16.msra.mxu0 %v1789
    %2475 = vmatpush.bf16.msra.mxu0 %v1785
    %2476 = vmatpush.bf16.msra.mxu0 %v1781
    %2477 = vmatmul.bf16.gmra.mxu0 %v529
    %v2478 = vpop.f32.mrf.mxu0
    %v2479 = vadd.f32 %v2466, %v2478
    %v2480 = vpop.f32.mrf.mxu0
    %2481 = vdwg.mxu0
    %v2482 = vpack.c.bf16 %v2271, %v2167
    %v2483 = vpack.c.bf16 %v2479, %v2375
    %v2484 = vld [vmem:[#allocation10] sm:$0xf]
    %2486 = vst [vmem:[#allocation1] ss:$9 sm:$0xff] %v2484
    %v2487 = vld [vmem:[#allocation1] sm:$0xff]
    %v2488 = vld [vmem:[#allocation1 + $0x9] sm:$0xff]
    %v2489 = vld [vmem:[#allocation1 + $0x12] sm:$0xff]
    %v2490 = vld [vmem:[#allocation1 + $0x1b] sm:$0xff]
    %v2491 = vpack.i.b16 %v2487, %v2487
    %v2493 = vperm.slane %v2491, 0
    %v2494 = vpack.i.b16 %v2488, %v2488
    %v2496 = vperm.slane %v2494, 0
    %v2497 = vpack.i.b16 %v2489, %v2489
    %v2499 = vperm.slane %v2497, 0
    %v2500 = vpack.i.b16 %v2490, %v2490
    %v2502 = vperm.slane %v2500, 0
    %v2503 = vunpack.c.l.bf16 %v2482
    %v2504 = vunpack.c.h.bf16 %v2482
    %v2505 = vunpack.c.l.bf16 %v2483
    %v2506 = vunpack.c.h.bf16 %v2483
    %v2507 = vunpack.c.l.bf16 %v2493
    %v2508 = vunpack.c.l.bf16 %v2496
    %v2509 = vunpack.c.l.bf16 %v2499
    %v2510 = vunpack.c.l.bf16 %v2502
    %v2511 = vadd.f32 %v2503, %v2507
    %v2512 = vadd.f32 %v2504, %v2508
    %v2513 = vadd.f32 %v2505, %v2509
    %v2514 = vadd.f32 %v2506, %v2510
    %v2515 = vpack.c.bf16 %v2512, %v2511
    %v2516 = vpack.c.bf16 %v2514, %v2513
    %v2517 = vunpack.c.l.bf16 %v2515
    %v2518 = vunpack.c.h.bf16 %v2515
    %v2519 = vunpack.c.l.bf16 %v2516
    %v2520 = vunpack.c.h.bf16 %v2516
    %v2521 = vmax.f32 %v2517, 0.0
    %v2522 = vmax.f32 %v2518, 0.0
    %v2523 = vmax.f32 %v2519, 0.0
    %v2524 = vmax.f32 %v2520, 0.0
    %v2525 = vpack.c.bf16 %v2521, %v2521
    %v2526 = vpack.c.bf16 %v2522, %v2522
    %v2527 = vpack.c.bf16 %v2523, %v2523
    %v2528 = vpack.c.bf16 %v2524, %v2524
    %v2529 = vld [vmem:[#allocation11] sm:$0xf]
    %v2530 = vld [vmem:[#allocation11 + $0x4] sm:$0xf]
    %v2531 = vld [vmem:[#allocation11 + $0x8] sm:$0xf]
    %v2532 = vld [vmem:[#allocation11 + $0xc] sm:$0xf]
    %v2533 = vld [vmem:[#allocation11 + $0x10] sm:$0xf]
    %v2534 = vld [vmem:[#allocation11 + $0x14] sm:$0xf]
    %v2535 = vld [vmem:[#allocation11 + $0x18] sm:$0xf]
    %v2536 = vld [vmem:[#allocation11 + $0x1c] sm:$0xf]
    %v2537 = vld [vmem:[#allocation11 + $0x20] sm:$0xf]
    %v2538 = vld [vmem:[#allocation11 + $0x24] sm:$0xf]
    %v2539 = vld [vmem:[#allocation11 + $0x28] sm:$0xf]
    %v2540 = vld [vmem:[#allocation11 + $0x2c] sm:$0xf]
    %v2541 = vld [vmem:[#allocation11 + $0x30] sm:$0xf]
    %v2542 = vld [vmem:[#allocation11 + $0x34] sm:$0xf]
    %v2543 = vld [vmem:[#allocation11 + $0x38] sm:$0xf]
    %v2544 = vld [vmem:[#allocation11 + $0x3c] sm:$0xf]
    %v2545 = vld [vmem:[#allocation11 + $0x40] sm:$0xf]
    %v2546 = vld [vmem:[#allocation11 + $0x44] sm:$0xf]
    %v2547 = vld [vmem:[#allocation11 + $0x48] sm:$0xf]
    %v2548 = vld [vmem:[#allocation11 + $0x4c] sm:$0xf]
    %v2549 = vld [vmem:[#allocation11 + $0x50] sm:$0xf]
    %v2550 = vld [vmem:[#allocation11 + $0x54] sm:$0xf]
    %v2551 = vld [vmem:[#allocation11 + $0x58] sm:$0xf]
    %v2552 = vld [vmem:[#allocation11 + $0x5c] sm:$0xf]
    %v2553 = vld [vmem:[#allocation11 + $0x60] sm:$0xf]
    %v2554 = vld [vmem:[#allocation11 + $0x64] sm:$0xf]
    %v2555 = vld [vmem:[#allocation11 + $0x68] sm:$0xf]
    %v2556 = vld [vmem:[#allocation11 + $0x6c] sm:$0xf]
    %v2557 = vld [vmem:[#allocation11 + $0x70] sm:$0xf]
    %v2558 = vld [vmem:[#allocation11 + $0x74] sm:$0xf]
    %v2559 = vld [vmem:[#allocation11 + $0x78] sm:$0xf]
    %v2560 = vld [vmem:[#allocation11 + $0x7c] sm:$0xf]
    %v2561 = vld [vmem:[#allocation11 + $0x80] sm:$0xf]
    %v2562 = vld [vmem:[#allocation11 + $0x84] sm:$0xf]
    %v2563 = vld [vmem:[#allocation11 + $0x88] sm:$0xf]
    %v2564 = vld [vmem:[#allocation11 + $0x8c] sm:$0xf]
    %v2565 = vld [vmem:[#allocation11 + $0x90] sm:$0xf]
    %v2566 = vld [vmem:[#allocation11 + $0x94] sm:$0xf]
    %v2567 = vld [vmem:[#allocation11 + $0x98] sm:$0xf]
    %v2568 = vld [vmem:[#allocation11 + $0x9c] sm:$0xf]
    %v2569 = vld [vmem:[#allocation11 + $0xa0] sm:$0xf]
    %v2570 = vld [vmem:[#allocation11 + $0xa4] sm:$0xf]
    %v2571 = vld [vmem:[#allocation11 + $0xa8] sm:$0xf]
    %v2572 = vld [vmem:[#allocation11 + $0xac] sm:$0xf]
    %v2573 = vld [vmem:[#allocation11 + $0xb0] sm:$0xf]
    %v2574 = vld [vmem:[#allocation11 + $0xb4] sm:$0xf]
    %v2575 = vld [vmem:[#allocation11 + $0xb8] sm:$0xf]
    %v2576 = vld [vmem:[#allocation11 + $0xbc] sm:$0xf]
    %v2577 = vld [vmem:[#allocation11 + $0xc0] sm:$0xf]
    %v2578 = vld [vmem:[#allocation11 + $0xc4] sm:$0xf]
    %v2579 = vld [vmem:[#allocation11 + $0xc8] sm:$0xf]
    %v2580 = vld [vmem:[#allocation11 + $0xcc] sm:$0xf]
    %v2581 = vld [vmem:[#allocation11 + $0xd0] sm:$0xf]
    %v2582 = vld [vmem:[#allocation11 + $0xd4] sm:$0xf]
    %v2583 = vld [vmem:[#allocation11 + $0xd8] sm:$0xf]
    %v2584 = vld [vmem:[#allocation11 + $0xdc] sm:$0xf]
    %v2585 = vld [vmem:[#allocation11 + $0xe0] sm:$0xf]
    %v2586 = vld [vmem:[#allocation11 + $0xe4] sm:$0xf]
    %v2587 = vld [vmem:[#allocation11 + $0xe8] sm:$0xf]
    %v2588 = vld [vmem:[#allocation11 + $0xec] sm:$0xf]
    %v2589 = vld [vmem:[#allocation11 + $0xf0] sm:$0xf]
    %v2590 = vld [vmem:[#allocation11 + $0xf4] sm:$0xf]
    %v2591 = vld [vmem:[#allocation11 + $0xf8] sm:$0xf]
    %v2592 = vld [vmem:[#allocation11 + $0xfc] sm:$0xf]
    %v2657 = vunpack.c.l.b16 %v2529
    %v2658 = vunpack.c.l.b16 %v2530
    %v2659 = vunpack.c.l.b16 %v2531
    %v2660 = vunpack.c.l.b16 %v2532
    %v2661 = vunpack.c.l.b16 %v2533
    %v2662 = vunpack.c.l.b16 %v2534
    %v2663 = vunpack.c.l.b16 %v2535
    %v2664 = vunpack.c.l.b16 %v2536
    %v2665 = vunpack.c.l.b16 %v2537
    %v2666 = vunpack.c.l.b16 %v2538
    %v2667 = vunpack.c.l.b16 %v2539
    %v2668 = vunpack.c.l.b16 %v2540
    %v2669 = vunpack.c.l.b16 %v2541
    %v2670 = vunpack.c.l.b16 %v2542
    %v2671 = vunpack.c.l.b16 %v2543
    %v2672 = vunpack.c.l.b16 %v2544
    %v2673 = vunpack.c.l.b16 %v2545
    %v2674 = vunpack.c.l.b16 %v2546
    %v2675 = vunpack.c.l.b16 %v2547
    %v2676 = vunpack.c.l.b16 %v2548
    %v2677 = vunpack.c.l.b16 %v2549
    %v2678 = vunpack.c.l.b16 %v2550
    %v2679 = vunpack.c.l.b16 %v2551
    %v2680 = vunpack.c.l.b16 %v2552
    %v2681 = vunpack.c.l.b16 %v2553
    %v2682 = vunpack.c.l.b16 %v2554
    %v2683 = vunpack.c.l.b16 %v2555
    %v2684 = vunpack.c.l.b16 %v2556
    %v2685 = vunpack.c.l.b16 %v2557
    %v2686 = vunpack.c.l.b16 %v2558
    %v2687 = vunpack.c.l.b16 %v2559
    %v2688 = vunpack.c.l.b16 %v2560
    %v2689 = vunpack.c.l.b16 %v2561
    %v2690 = vunpack.c.l.b16 %v2562
    %v2691 = vunpack.c.l.b16 %v2563
    %v2692 = vunpack.c.l.b16 %v2564
    %v2693 = vunpack.c.l.b16 %v2565
    %v2694 = vunpack.c.l.b16 %v2566
    %v2695 = vunpack.c.l.b16 %v2567
    %v2696 = vunpack.c.l.b16 %v2568
    %v2697 = vunpack.c.l.b16 %v2569
    %v2698 = vunpack.c.l.b16 %v2570
    %v2699 = vunpack.c.l.b16 %v2571
    %v2700 = vunpack.c.l.b16 %v2572
    %v2701 = vunpack.c.l.b16 %v2573
    %v2702 = vunpack.c.l.b16 %v2574
    %v2703 = vunpack.c.l.b16 %v2575
    %v2704 = vunpack.c.l.b16 %v2576
    %v2705 = vunpack.c.l.b16 %v2577
    %v2706 = vunpack.c.l.b16 %v2578
    %v2707 = vunpack.c.l.b16 %v2579
    %v2708 = vunpack.c.l.b16 %v2580
    %v2709 = vunpack.c.l.b16 %v2581
    %v2710 = vunpack.c.l.b16 %v2582
    %v2711 = vunpack.c.l.b16 %v2583
    %v2712 = vunpack.c.l.b16 %v2584
    %v2713 = vunpack.c.l.b16 %v2585
    %v2714 = vunpack.c.l.b16 %v2586
    %v2715 = vunpack.c.l.b16 %v2587
    %v2716 = vunpack.c.l.b16 %v2588
    %v2717 = vunpack.c.l.b16 %v2589
    %v2718 = vunpack.c.l.b16 %v2590
    %v2719 = vunpack.c.l.b16 %v2591
    %v2720 = vunpack.c.l.b16 %v2592
    %v2721 = vpack.c.b16 %v2658, %v2657
    %v2722 = vpack.c.b16 %v2660, %v2659
    %v2723 = vpack.c.b16 %v2662, %v2661
    %v2724 = vpack.c.b16 %v2664, %v2663
    %v2725 = vpack.c.b16 %v2666, %v2665
    %v2726 = vpack.c.b16 %v2668, %v2667
    %v2727 = vpack.c.b16 %v2670, %v2669
    %v2728 = vpack.c.b16 %v2672, %v2671
    %v2729 = vpack.c.b16 %v2674, %v2673
    %v2730 = vpack.c.b16 %v2676, %v2675
    %v2731 = vpack.c.b16 %v2678, %v2677
    %v2732 = vpack.c.b16 %v2680, %v2679
    %v2733 = vpack.c.b16 %v2682, %v2681
    %v2734 = vpack.c.b16 %v2684, %v2683
    %v2735 = vpack.c.b16 %v2686, %v2685
    %v2736 = vpack.c.b16 %v2688, %v2687
    %v2737 = vpack.c.b16 %v2690, %v2689
    %v2738 = vpack.c.b16 %v2692, %v2691
    %v2739 = vpack.c.b16 %v2694, %v2693
    %v2740 = vpack.c.b16 %v2696, %v2695
    %v2741 = vpack.c.b16 %v2698, %v2697
    %v2742 = vpack.c.b16 %v2700, %v2699
    %v2743 = vpack.c.b16 %v2702, %v2701
    %v2744 = vpack.c.b16 %v2704, %v2703
    %v2745 = vpack.c.b16 %v2706, %v2705
    %v2746 = vpack.c.b16 %v2708, %v2707
    %v2747 = vpack.c.b16 %v2710, %v2709
    %v2748 = vpack.c.b16 %v2712, %v2711
    %v2749 = vpack.c.b16 %v2714, %v2713
    %v2750 = vpack.c.b16 %v2716, %v2715
    %v2751 = vpack.c.b16 %v2718, %v2717
    %v2752 = vpack.c.b16 %v2720, %v2719
    %2785 = vmatpush.bf16.msra.mxu0 %v2728
    %2786 = vmatpush.bf16.msra.mxu0 %v2727
    %2787 = vmatpush.bf16.msra.mxu0 %v2726
    %2788 = vmatpush.bf16.msra.mxu0 %v2725
    %2789 = vmatpush.bf16.msra.mxu0 %v2724
    %2790 = vmatpush.bf16.msra.mxu0 %v2723
    %2791 = vmatpush.bf16.msra.mxu0 %v2722
    %2792 = vmatpush.bf16.msra.mxu0 %v2721
    %2793 = vmatmul.bf16.gmra.mxu0 %v2525
    %v2794 = vpop.f32.mrf.mxu0
    %v2795 = vadd.f32 0.0, %v2794
    %v2796 = vpop.f32.mrf.mxu0
    %2797 = vdwg.mxu0
    %2798 = vmatpush.bf16.msra.mxu0 %v2736
    %2799 = vmatpush.bf16.msra.mxu0 %v2735
    %2800 = vmatpush.bf16.msra.mxu0 %v2734
    %2801 = vmatpush.bf16.msra.mxu0 %v2733
    %2802 = vmatpush.bf16.msra.mxu0 %v2732
    %2803 = vmatpush.bf16.msra.mxu0 %v2731
    %2804 = vmatpush.bf16.msra.mxu0 %v2730
    %2805 = vmatpush.bf16.msra.mxu0 %v2729
    %2806 = vmatmul.bf16.gmra.mxu0 %v2526
    %v2807 = vpop.f32.mrf.mxu0
    %v2808 = vadd.f32 %v2795, %v2807
    %v2809 = vpop.f32.mrf.mxu0
    %2810 = vdwg.mxu0
    %2811 = vmatpush.bf16.msra.mxu0 %v2744
    %2812 = vmatpush.bf16.msra.mxu0 %v2743
    %2813 = vmatpush.bf16.msra.mxu0 %v2742
    %2814 = vmatpush.bf16.msra.mxu0 %v2741
    %2815 = vmatpush.bf16.msra.mxu0 %v2740
    %2816 = vmatpush.bf16.msra.mxu0 %v2739
    %2817 = vmatpush.bf16.msra.mxu0 %v2738
    %2818 = vmatpush.bf16.msra.mxu0 %v2737
    %2819 = vmatmul.bf16.gmra.mxu0 %v2527
    %v2820 = vpop.f32.mrf.mxu0
    %v2821 = vadd.f32 %v2808, %v2820
    %v2822 = vpop.f32.mrf.mxu0
    %2823 = vdwg.mxu0
    %2824 = vmatpush.bf16.msra.mxu0 %v2752
    %2825 = vmatpush.bf16.msra.mxu0 %v2751
    %2826 = vmatpush.bf16.msra.mxu0 %v2750
    %2827 = vmatpush.bf16.msra.mxu0 %v2749
    %2828 = vmatpush.bf16.msra.mxu0 %v2748
    %2829 = vmatpush.bf16.msra.mxu0 %v2747
    %2830 = vmatpush.bf16.msra.mxu0 %v2746
    %2831 = vmatpush.bf16.msra.mxu0 %v2745
    %2832 = vmatmul.bf16.gmra.mxu0 %v2528
    %v2833 = vpop.f32.mrf.mxu0
    %v2834 = vadd.f32 %v2821, %v2833
    %v2835 = vpop.f32.mrf.mxu0
    %2836 = vdwg.mxu0
    %v2837 = vpack.c.bf16 %v2834, %v2834
    %v2838 = vld [vmem:[%s6] sm:$0x1]
    %v2840 = vpack.i.b16 %v2838, %v2838
    %v2842 = vperm.slane %v2840, 0
    %v2843 = vunpack.c.l.bf16 %v2837
    %v2844 = vunpack.c.l.bf16 %v2842
    %v2845 = vadd.f32 %v2843, %v2844
    %v2846 = vpack.c.bf16 %v2845, %v2845
    %v2847 = vunpack.c.l.bf16 %v2846
    %v2848 = vmax.f32 %v2847, 0.0
    %v2849 = vpack.c.bf16 %v2848, %v2848
    %v2850 = vld [vmem:[#allocation13] sm:$0xf]
    %v2851 = vld [vmem:[#allocation13 + $0x4] sm:$0xf]
    %v2852 = vld [vmem:[#allocation13 + $0x8] sm:$0xf]
    %v2853 = vld [vmem:[#allocation13 + $0xc] sm:$0xf]
    %v2854 = vld [vmem:[#allocation13 + $0x10] sm:$0xf]
    %v2855 = vld [vmem:[#allocation13 + $0x14] sm:$0xf]
    %v2856 = vld [vmem:[#allocation13 + $0x18] sm:$0xf]
    %v2857 = vld [vmem:[#allocation13 + $0x1c] sm:$0xf]
    %v2858 = vld [vmem:[#allocation13 + $0x20] sm:$0xf]
    %v2859 = vld [vmem:[#allocation13 + $0x24] sm:$0xf]
    %v2860 = vld [vmem:[#allocation13 + $0x28] sm:$0xf]
    %v2861 = vld [vmem:[#allocation13 + $0x2c] sm:$0xf]
    %v2862 = vld [vmem:[#allocation13 + $0x30] sm:$0xf]
    %v2863 = vld [vmem:[#allocation13 + $0x34] sm:$0xf]
    %v2864 = vld [vmem:[#allocation13 + $0x38] sm:$0xf]
    %v2865 = vld [vmem:[#allocation13 + $0x3c] sm:$0xf]
    %v2866 = vld [vmem:[%s8] sm:$0x1]
    %v2868 = vperm.slane %v2866, 0
    %v2886 = vunpack.c.l.b16 %v2850
    %v2887 = vunpack.c.l.b16 %v2851
    %v2888 = vunpack.c.l.b16 %v2852
    %v2889 = vunpack.c.l.b16 %v2853
    %v2890 = vunpack.c.l.b16 %v2854
    %v2891 = vunpack.c.l.b16 %v2855
    %v2892 = vunpack.c.l.b16 %v2856
    %v2893 = vunpack.c.l.b16 %v2857
    %v2894 = vunpack.c.l.b16 %v2858
    %v2895 = vunpack.c.l.b16 %v2859
    %v2896 = vunpack.c.l.b16 %v2860
    %v2897 = vunpack.c.l.b16 %v2861
    %v2898 = vunpack.c.l.b16 %v2862
    %v2899 = vunpack.c.l.b16 %v2863
    %v2900 = vunpack.c.l.b16 %v2864
    %v2901 = vunpack.c.l.b16 %v2865
    %v2902 = vpack.c.b16 %v2887, %v2886
    %v2903 = vpack.c.b16 %v2889, %v2888
    %v2904 = vpack.c.b16 %v2891, %v2890
    %v2905 = vpack.c.b16 %v2893, %v2892
    %v2906 = vpack.c.b16 %v2895, %v2894
    %v2907 = vpack.c.b16 %v2897, %v2896
    %v2908 = vpack.c.b16 %v2899, %v2898
    %v2909 = vpack.c.b16 %v2901, %v2900
    %2918 = vmatpush.bf16.msra.mxu0 %v2909
    %2919 = vmatpush.bf16.msra.mxu0 %v2908
    %2920 = vmatpush.bf16.msra.mxu0 %v2907
    %2921 = vmatpush.bf16.msra.mxu0 %v2906
    %2922 = vmatpush.bf16.msra.mxu0 %v2905
    %2923 = vmatpush.bf16.msra.mxu0 %v2904
    %2924 = vmatpush.bf16.msra.mxu0 %v2903
    %2925 = vmatpush.bf16.msra.mxu0 %v2902
    %2926 = vmatmul.bf16.gmra.mxu0 %v2849
    %v2927 = vpop.f32.mrf.mxu0
    %v2928 = vadd.f32 %v2868, %v2927
    %v2929 = vpop.f32.mrf.mxu0
    %2930 = vdwg.mxu0
    %2931 = vst [vmem:[#allocation14] sm:$0xff] %v2928
    // Predicated region
    $region66: #{simple_mlp_forward.1} parent=1 // pred_check
      _
    $region67: #{simple_mlp_forward.1} parent=1 // pred_check_branch
      %2933 = sbr.rel (0) target = $region69
    $region68: #{simple_mlp_forward.1} parent=1 // pred_region
      %2935 = vsyncadd [#allocation4], 0
      %s2937 = sshll.u32 [#allocation14], 4
      %s2938 = int_to_ptr.vmem [resolvable:$true] %s2937
      %s2939 = sshll.u32 %s9, 4
      %s2940 = int_to_ptr.hbm [resolvable:$true] %s2939
      %2942 = dma.vmem_to_hbm [thread:$0]  %s2938, 128, %s2940, [#allocation4]
    $region69: #{simple_mlp_forward.1} parent=1 // pred_fallthru
      _
    // Predicated region
    $region70: #{simple_mlp_forward.1} parent=1 // pred_check
      _
    $region71: #{simple_mlp_forward.1} parent=1 // pred_check_branch
      %2944 = sbr.rel (0) target = $region73
    $region72: #{simple_mlp_forward.1} parent=1 // pred_region
      %2946 = dma.done [#allocation4], 128
    $region73: #{simple_mlp_forward.1} parent=1 // pred_fallthru
      _
    %2947 = vsyncpa [#allocation3], 1
    %2948 = vsyncpa [#allocation6], 1
    %2949 = vsyncpa [#allocation9], 1
    %2950 = vsyncpa [#allocation12], 1
    %2951 = vsyncpa [#allocation4], 1

</llo_original>
